<compile_context>
chip_gen: v6e
topology: v6e:2x2x1
jax: 0.10.0
libtpu: 0.0.40
codegen_flags: <defaults>
</compile_context>

<pallas_src>
import math
import functools

import jax
import jax.numpy as jnp
from jax import lax
from jax.experimental import pallas as pl
from jax.experimental.pallas import tpu as pltpu


_NEG_INF = float(jnp.finfo(jnp.float32).min)
_VMEM_LIMIT = 48 * 1024 * 1024   # fits every generation (v7x physical = 64 MiB)


def _fit_tile(dim, preferred, granule):
    """Largest power-of-two tile <= preferred that divides dim (else full dim)."""
    t = preferred
    while t >= granule:
        if dim % t == 0:
            return t
        t //= 2
    return dim


# ---------------------------------------------------------------------------
# Tiled, pipelined linear:  y = x @ w_t + b   (bf16 MXU operands, fp32 acc)
# ---------------------------------------------------------------------------

def _linear_kernel(x_ref, w_ref, b_ref, o_ref, acc_ref):
    @pl.when(pl.program_id(2) == 0)
    def _init():
        acc_ref[...] = jnp.zeros(acc_ref.shape, jnp.float32)

    # Cast the activation tile to the (bf16) weight dtype in-kernel: keeps the
    # HBM->VMEM DMA at the caller's dtype but feeds the MXU bf16 operands.
    acc_ref[...] += jnp.dot(x_ref[...].astype(w_ref.dtype), w_ref[...],
                            preferred_element_type=jnp.float32)

    @pl.when(pl.program_id(2) == pl.num_programs(2) - 1)
    def _finalize():
        o_ref[...] = (acc_ref[...] + b_ref[...].astype(jnp.float32)).astype(o_ref.dtype)


def pallas_linear(x, w_t, b, *, out_dtype=None, bm=512, bn=512, bk=512):
    """y = x @ w_t + b.  x: (M, K), w_t: (K, N) (torch weight transposed), b: (1, N)."""
    M, K = x.shape
    _, N = w_t.shape
    if out_dtype is None:
        out_dtype = x.dtype
    bm = _fit_tile(M, bm, 16)     # sublane granule 16 (bf16 friendly)
    bn = _fit_tile(N, bn, 128)
    bk = _fit_tile(K, bk, 128)
    grid = (M // bm, N // bn, K // bk)
    return pl.pallas_call(
        _linear_kernel,
        out_shape=jax.ShapeDtypeStruct((M, N), out_dtype),
        grid=grid,
        in_specs=[
            pl.BlockSpec((bm, bk), lambda i, j, k: (i, k)),
            pl.BlockSpec((bk, bn), lambda i, j, k: (k, j)),
            pl.BlockSpec((1, bn), lambda i, j, k: (0, j)),
        ],
        out_specs=pl.BlockSpec((bm, bn), lambda i, j, k: (i, j)),
        scratch_shapes=[pltpu.VMEM((bm, bn), jnp.float32)],
        compiler_params=pltpu.CompilerParams(
            dimension_semantics=("parallel", "parallel", "arbitrary"),
            vmem_limit_bytes=_VMEM_LIMIT),
    )(x, w_t, b)


# ---------------------------------------------------------------------------
# One-shot K RoPE: reads the K columns of the fused QKV activation, writes the
# rotated K (B, S, n_kv) in bf16.
# ---------------------------------------------------------------------------

def _rope_k_kernel(k_ref, cos_ref, sin_ref, o_ref, *, n_heads, head_dim):
    cos = cos_ref[...].astype(jnp.float32)                       # (bs, D)
    sin = sin_ref[...].astype(jnp.float32)                       # sin * sign pattern
    for h in range(n_heads):
        x = k_ref[:, h * head_dim:(h + 1) * head_dim].astype(jnp.float32)
        rot = x * cos + pltpu.roll(x, shift=head_dim // 2, axis=1) * sin
        o_ref[:, h * head_dim:(h + 1) * head_dim] = rot.astype(o_ref.dtype)


def pallas_rope_k(qkv3, cos, sin_signed, *, num_kv_heads, head_dim, k_col_block,
                  block_s=256):
    B, S, _ = qkv3.shape
    n_kv = num_kv_heads * head_dim
    bs = _fit_tile(S, block_s, 16)
    kernel = functools.partial(_rope_k_kernel, n_heads=num_kv_heads, head_dim=head_dim)
    return pl.pallas_call(
        kernel,
        out_shape=jax.ShapeDtypeStruct((B, S, n_kv), jnp.bfloat16),
        grid=(B, S // bs),
        in_specs=[
            # K region of the fused QKV activation = column block `k_col_block`
            # when the last-dim block width is n_kv.
            pl.BlockSpec((None, bs, n_kv), lambda b, i: (b, i, k_col_block)),
            pl.BlockSpec((bs, head_dim), lambda b, i: (i, 0)),
            pl.BlockSpec((bs, head_dim), lambda b, i: (i, 0)),
        ],
        out_specs=pl.BlockSpec((None, bs, n_kv), lambda b, i: (b, i, 0)),
        compiler_params=pltpu.CompilerParams(
            dimension_semantics=("parallel", "parallel"),
            vmem_limit_bytes=_VMEM_LIMIT),
    )(qkv3, cos, sin_signed)


# ---------------------------------------------------------------------------
# Flash attention: fused Q RoPE, GQA-stacked queries, compacted causal grid.
# ---------------------------------------------------------------------------

def _flash_attn_kernel(qi_tbl, ki_tbl, q_ref, k_ref, v_ref, cos_ref, sin_ref,
                       o_ref, qrot_ref, m_ref, l_ref, acc_ref,
                       *, scale, block_q, block_kv, grp, head_dim):
    pair = pl.program_id(2)
    qi = qi_tbl[pair]
    ki = ki_tbl[pair]
    # Last (diagonal) kv block for this q block under causal masking.
    last_ki = (qi * block_q + block_q - 1) // block_kv

    @pl.when(ki == 0)
    def _init():
        # RoPE + 1/sqrt(D) scale applied once per q block; the rotated, scaled
        # queries of all `grp` heads are stacked row-wise in VMEM scratch.
        cos = cos_ref[...].astype(jnp.float32)                   # (bq, D)
        sin = sin_ref[...].astype(jnp.float32)
        for g in range(grp):
            qh = q_ref[:, g * head_dim:(g + 1) * head_dim].astype(jnp.float32)
            qh = (qh * cos + pltpu.roll(qh, shift=head_dim // 2, axis=1) * sin) * scale
            qrot_ref[g * block_q:(g + 1) * block_q, :] = qh.astype(qrot_ref.dtype)
        m_ref[...] = jnp.full(m_ref.shape, -jnp.inf, jnp.float32)
        l_ref[...] = jnp.zeros(l_ref.shape, jnp.float32)
        acc_ref[...] = jnp.zeros(acc_ref.shape, jnp.float32)

    k = k_ref[...]                                               # (bkv, D) bf16, pre-rotated
    v = v_ref[...]                                               # (bkv, D) bf16
    qr = qrot_ref[...]                                           # (grp*bq, D) bf16, pre-scaled
    # QK^T without materializing a transpose: contract both on the D axis.
    s = lax.dot_general(qr, k, (((1,), (1,)), ((), ())),
                        preferred_element_type=jnp.float32)      # (grp*bq, bkv)

    # Causal mask (cheap VPU filler under the MXU work; always applied).
    rows = lax.broadcasted_iota(jnp.int32, s.shape, 0)
    cols = lax.broadcasted_iota(jnp.int32, s.shape, 1)
    q_pos = qi * block_q + rows % block_q       # stacked grp heads share positions
    k_pos = ki * block_kv + cols
    mask = k_pos <= q_pos
    s = jnp.where(mask, s, _NEG_INF)

    m_prev = m_ref[...]
    m_new = jnp.maximum(m_prev, jnp.max(s, axis=-1, keepdims=True))
    alpha = jnp.exp(m_prev - m_new)
    p = jnp.where(mask, jnp.exp(s - m_new), 0.0)   # explicit mask: no reliance on underflow
    l_ref[...] = alpha * l_ref[...] + jnp.sum(p, axis=-1, keepdims=True)
    pv = lax.dot_general(p.astype(v.dtype), v, (((1,), (0,)), ((), ())),
                         preferred_element_type=jnp.float32)
    acc_ref[...] = alpha * acc_ref[...] + pv
    m_ref[...] = m_new

    @pl.when(ki == last_ki)
    def _finalize():
        inv_l = pl.reciprocal(l_ref[...], approx=True)
        out = acc_ref[...] * inv_l                               # (grp*bq, D) fp32
        for g in range(grp):
            o_ref[:, g * head_dim:(g + 1) * head_dim] = (
                out[g * block_q:(g + 1) * block_q, :].astype(o_ref.dtype))


def _build_causal_schedule(n_q_blocks, n_kv_blocks, bq, bkv):
    """Enumerate only the (qi, ki) tile pairs that intersect the causal mask."""
    qs, ks = [], []
    for qi in range(n_q_blocks):
        last = min(n_kv_blocks - 1, (qi * bq + bq - 1) // bkv)
        for ki in range(last + 1):
            qs.append(qi)
            ks.append(ki)
    return jnp.asarray(qs, jnp.int32), jnp.asarray(ks, jnp.int32)


def pallas_flash_attention(qkv3, k_rot, cos, sin_signed, *, num_kv_heads, group,
                           head_dim, scale, block_q=256, block_kv=256):
    """qkv3: (B, S, n_q + 2*n_kv) fused projection output (bf16);
    k_rot: (B, S, n_kv) RoPE'd keys;  cos/sin_signed: (S, D).
    Returns attention output in (B, S, n_q) layout (head-major columns)."""
    B, S, _ = qkv3.shape
    Hkv, grp, D = num_kv_heads, group, head_dim
    n_q = Hkv * grp * D

    bq = _fit_tile(S, block_q, 16)
    bkv = _fit_tile(S, block_kv, 16)
    nqb, nkb = S // bq, S // bkv
    qi_tbl, ki_tbl = _build_causal_schedule(nqb, nkb, bq, bkv)
    n_pairs = int(qi_tbl.shape[0])
    v_col0 = (grp + 1) * Hkv    # block index of v head 0 when last-dim block width = D

    kernel = functools.partial(_flash_attn_kernel, scale=scale, block_q=bq,
                               block_kv=bkv, grp=grp, head_dim=D)

    grid_spec = pltpu.PrefetchScalarGridSpec(
        num_scalar_prefetch=2,
        grid=(B, Hkv, n_pairs),
        in_specs=[
            # q heads of kv-group h are a contiguous column block of width grp*D.
            pl.BlockSpec((None, bq, grp * D), lambda b, h, p, qt, kt: (b, qt[p], h)),
            # pre-rotated K, head h.
            pl.BlockSpec((None, bkv, D), lambda b, h, p, qt, kt: (b, kt[p], h)),
            # V read straight from the fused QKV activation, head h.
            pl.BlockSpec((None, bkv, D), lambda b, h, p, qt, kt: (b, kt[p], v_col0 + h)),
            pl.BlockSpec((bq, D), lambda b, h, p, qt, kt: (qt[p], 0)),   # cos (q side)
            pl.BlockSpec((bq, D), lambda b, h, p, qt, kt: (qt[p], 0)),   # sin (q side)
        ],
        out_specs=pl.BlockSpec((None, bq, grp * D),
                               lambda b, h, p, qt, kt: (b, qt[p], h)),
        scratch_shapes=[
            pltpu.VMEM((grp * bq, D), jnp.bfloat16),   # RoPE'd, scaled q block
            pltpu.VMEM((grp * bq, 1), jnp.float32),    # running max m
            pltpu.VMEM((grp * bq, 1), jnp.float32),    # running denom l
            pltpu.VMEM((grp * bq, D), jnp.float32),    # output accumulator
        ],
    )

    return pl.pallas_call(
        kernel,
        out_shape=jax.ShapeDtypeStruct((B, S, n_q), jnp.bfloat16),
        grid_spec=grid_spec,
        compiler_params=pltpu.CompilerParams(
            dimension_semantics=("parallel", "parallel", "arbitrary"),
            vmem_limit_bytes=_VMEM_LIMIT),
    )(qi_tbl, ki_tbl, qkv3, k_rot, qkv3, cos, sin_signed)


# ---------------------------------------------------------------------------
# RoPE tables (default Llama-style rotary embedding)
# ---------------------------------------------------------------------------

def rope_tables(seq_len, head_dim, rope_theta, dtype=jnp.float32):
    pos = jnp.arange(seq_len, dtype=jnp.float32)
    inv_freq = 1.0 / (rope_theta ** (
        jnp.arange(0, head_dim, 2, dtype=jnp.float32) / head_dim))
    freqs = pos[:, None] * inv_freq[None, :]            # (S, D/2)
    emb = jnp.concatenate([freqs, freqs], axis=-1)      # (S, D)
    cos = jnp.cos(emb)
    sin = jnp.sin(emb)
    sign = jnp.concatenate([-jnp.ones(head_dim // 2), jnp.ones(head_dim // 2)])
    return cos.astype(dtype), sin.astype(dtype), (sin * sign).astype(dtype)


# ---------------------------------------------------------------------------
# Starcoder2Attention forward
# ---------------------------------------------------------------------------

def starcoder2_attention_forward(hidden_states, params, *, num_heads,
                                 num_key_value_heads, rope_theta,
                                 attn_block_q=256, attn_block_kv=256):
    B, S, H = hidden_states.shape
    D = H // num_heads
    Hkv = num_key_value_heads
    grp = num_heads // Hkv
    n_q = num_heads * D
    n_kv = Hkv * D

    x2 = hidden_states.reshape(B * S, H)

    w_qkv_bf = params["w_qkv_t"].astype(jnp.bfloat16)
    wo_bf = params["wo_t"].astype(jnp.bfloat16)

    # Fused Q/K/V projection: single tiled matmul over [wq | wk | wv], bf16 out.
    qkv = pallas_linear(x2, w_qkv_bf, params["b_qkv"], out_dtype=jnp.bfloat16)
    qkv3 = qkv.reshape(B, S, n_q + 2 * n_kv)             # free reshape, no transposes

    cos, _sin, sin_signed = rope_tables(S, D, rope_theta, jnp.bfloat16)

    # K RoPE applied once (reads K columns of qkv directly: column block = grp
    # when the last-dim block width is n_kv, since the q region spans grp*n_kv).
    k_rot = pallas_rope_k(qkv3, cos, sin_signed, num_kv_heads=Hkv, head_dim=D,
                          k_col_block=grp)

    # Flash attention over the compacted causal schedule; output lands directly
    # in (B, S, n_q) head-major layout, ready for the O projection.
    attn = pallas_flash_attention(
        qkv3, k_rot, cos, sin_signed,
        num_kv_heads=Hkv, group=grp, head_dim=D,
        scale=1.0 / math.sqrt(D),
        block_q=attn_block_q, block_kv=attn_block_kv)

    out = pallas_linear(attn.reshape(B * S, n_q), wo_bf, params["bo"],
                        out_dtype=hidden_states.dtype)
    # TODO(synk): attention_dropout / residual_dropout are identity in eval mode.
    # TODO(synk): past_key_value (KV cache) and sliding-window masking are not
    # implemented; this is the causal prefill path.
    return out.reshape(B, S, H)


# ---------------------------------------------------------------------------
# Pure-JAX reference (mirrors the HF eager path) for validation
# ---------------------------------------------------------------------------

def reference_forward(hidden_states, params, *, num_heads, num_key_value_heads,
                      rope_theta):
    B, S, H = hidden_states.shape
    D = H // num_heads
    grp = num_heads // num_key_value_heads
    n_q = num_heads * D
    n_kv = num_key_value_heads * D
    x2 = hidden_states.reshape(B * S, H)
    qkv = x2 @ params["w_qkv_t"] + params["b_qkv"][0]
    q = qkv[:, :n_q].reshape(B, S, num_heads, D).transpose(0, 2, 1, 3)
    k = qkv[:, n_q:n_q + n_kv].reshape(B, S, num_key_value_heads, D).transpose(0, 2, 1, 3)
    v = qkv[:, n_q + n_kv:].reshape(B, S, num_key_value_heads, D).transpose(0, 2, 1, 3)
    cos, sin, _ = rope_tables(S, D, rope_theta, jnp.float32)

    def rotate_half(x):
        x1, x2_ = jnp.split(x, 2, axis=-1)
        return jnp.concatenate([-x2_, x1], axis=-1)

    q = q * cos + rotate_half(q) * sin
    k = k * cos + rotate_half(k) * sin
    k = jnp.repeat(k, grp, axis=1)
    v = jnp.repeat(v, grp, axis=1)
    scores = jnp.einsum("bhqd,bhkd->bhqk", q, k) / math.sqrt(D)
    causal = jnp.tril(jnp.ones((S, S), dtype=bool))
    scores = jnp.where(causal[None, None], scores, jnp.finfo(jnp.float32).min)
    probs = jax.nn.softmax(scores.astype(jnp.float32), axis=-1).astype(q.dtype)
    attn = jnp.einsum("bhqk,bhkd->bhqd", probs, v)
    attn = attn.transpose(0, 2, 1, 3).reshape(B * S, n_q)
    out = attn @ params["wo_t"] + params["bo"][0]
    return out.reshape(B, S, H)


# ---------------------------------------------------------------------------
# Deterministic parameter init + main
# ---------------------------------------------------------------------------

def init_params(key, hidden_size, num_heads, num_kv_heads, dtype=jnp.float32):
    head_dim = hidden_size // num_heads
    n_q = num_heads * head_dim
    n_kv = num_kv_heads * head_dim
    ks = jax.random.split(key, 8)
    scale = 0.02

    def lin(kw, kb, in_f, out_f):
        # torch nn.Linear weight is (out, in); store transposed (in, out).
        w = (scale * jax.random.normal(kw, (out_f, in_f))).astype(dtype)
        b = (scale * jax.random.normal(kb, (out_f,))).astype(dtype)
        return w.T, b.reshape(1, out_f)

    wq_t, bq = lin(ks[0], ks[1], hidden_size, n_q)
    wk_t, bk = lin(ks[2], ks[3], hidden_size, n_kv)
    wv_t, bv = lin(ks[4], ks[5], hidden_size, n_kv)
    wo_t, bo = lin(ks[6], ks[7], n_q, hidden_size)
    return dict(
        w_qkv_t=jnp.concatenate([wq_t, wk_t, wv_t], axis=1),
        b_qkv=jnp.concatenate([bq, bk, bv], axis=1),
        wo_t=wo_t, bo=bo)


if __name__ == "__main__":
    # Small Starcoder2-like config (head_dim = 128 -> lane-aligned tiles).
    batch = 2
    seq = 128
    hidden_size = 256
    num_heads = 2
    num_key_value_heads = 1
    rope_theta = 10000.0

    key = jax.random.PRNGKey(0)
    k_x, k_p = jax.random.split(key)
    hidden_states = jax.random.normal(
        k_x, (batch, seq, hidden_size), dtype=jnp.float32)
    params = init_params(k_p, hidden_size, num_heads, num_key_value_heads)

    out = starcoder2_attention_forward(
        hidden_states, params,
        num_heads=num_heads,
        num_key_value_heads=num_key_value_heads,
        rope_theta=rope_theta,
        # Small blocks so the demo exercises the compacted causal schedule,
        # the online-softmax accumulation and the diagonal-mask path
        # (4 q blocks x up to 4 kv blocks -> 10 scheduled tile pairs).
        attn_block_q=32, attn_block_kv=32,
    )
    out = jax.block_until_ready(out)

    ref = reference_forward(
        hidden_states, params,
        num_heads=num_heads,
        num_key_value_heads=num_key_value_heads,
        rope_theta=rope_theta)

    assert out.shape == (batch, seq, hidden_size)
    assert bool(jnp.all(jnp.isfinite(out)))
    max_err = float(jnp.max(jnp.abs(out - ref)))
    assert max_err < 5e-2, f"max abs error vs reference: {max_err}"
    print("KERNEL_OK")
</pallas_src>

<mosaic_0001>
module attributes {stable_mosaic.version = 11 : i64} {
  func.func @_linear_kernel(%arg0: i32, %arg1: i32, %arg2: i32, %arg3: memref<256x256xf32, #tpu.memory_space<vmem>>, %arg4: memref<256x512xbf16, #tpu.memory_space<vmem>>, %arg5: memref<1x512xf32, #tpu.memory_space<vmem>>, %arg6: memref<256x512xbf16, #tpu.memory_space<vmem>>, %arg7: memref<256x512xf32, #tpu.memory_space<vmem>>) attributes {dimension_semantics = [#tpu.dimension_semantics<parallel>, #tpu.dimension_semantics<parallel>, #tpu.dimension_semantics<arbitrary>], iteration_bounds = array<i64: 1, 1, 1>, scalar_prefetch = 0 : i64, scratch_operands = 1 : i64, tpu.core_type = #tpu.core_type<tc>, window_params = [{transform_indices = @transform_0, window_bounds = array<i64: 256, 256>}, {transform_indices = @transform_1, window_bounds = array<i64: 256, 512>}, {transform_indices = @transform_2, window_bounds = array<i64: 1, 512>}, {transform_indices = @transform_3, window_bounds = array<i64: 256, 512>}]} {
    %c0_i32 = arith.constant 0 : i32
    %0 = arith.cmpi eq, %arg2, %c0_i32 : i32
    %1 = arith.extui %0 : i1 to i32
    %c0_i32_0 = arith.constant 0 : i32
    %2 = arith.cmpi ne, %1, %c0_i32_0 : i32
    scf.if %2 {
      %cst_10 = arith.constant 0.000000e+00 : f32
      %13 = vector.broadcast %cst_10 : f32 to vector<256x512xf32>
      %c0_11 = arith.constant 0 : index
      %c0_12 = arith.constant 0 : index
      %14 = vector.load %arg7[%c0_11, %c0_12] : memref<256x512xf32, #tpu.memory_space<vmem>>, vector<256x512xf32>
      tpu.vector_store %arg7[%c0_11, %c0_12], %13 {strides = array<i32>} : memref<256x512xf32, #tpu.memory_space<vmem>>, vector<256x512xf32>,
    } else {
    }
    %c0 = arith.constant 0 : index
    %c0_1 = arith.constant 0 : index
    %3 = vector.load %arg7[%c0, %c0_1] : memref<256x512xf32, #tpu.memory_space<vmem>>, vector<256x512xf32>
    %c0_2 = arith.constant 0 : index
    %c0_3 = arith.constant 0 : index
    %4 = vector.load %arg3[%c0_2, %c0_3] : memref<256x256xf32, #tpu.memory_space<vmem>>, vector<256x256xf32>
    %5 = arith.truncf %4 : vector<256x256xf32> to vector<256x256xbf16>
    %c0_4 = arith.constant 0 : index
    %c0_5 = arith.constant 0 : index
    %6 = vector.load %arg4[%c0_4, %c0_5] : memref<256x512xbf16, #tpu.memory_space<vmem>>, vector<256x512xbf16>
    %cst = arith.constant dense<0.000000e+00> : vector<256x512xf32>
    %7 = tpu.matmul %5, %6, %cst {dimension_numbers = #tpu.dot_dimension_numbers<[1], [0], [0], [1], [0, 0, 1, 1], [], []>} : vector<256x256xbf16>, vector<256x512xbf16>, vector<256x512xf32> -> vector<256x512xf32>
    %8 = arith.addf %3, %7 : vector<256x512xf32>
    %c0_6 = arith.constant 0 : index
    %c0_7 = arith.constant 0 : index
    %9 = vector.load %arg7[%c0_6, %c0_7] : memref<256x512xf32, #tpu.memory_space<vmem>>, vector<256x512xf32>
    tpu.vector_store %arg7[%c0_6, %c0_7], %8 {strides = array<i32>} : memref<256x512xf32, #tpu.memory_space<vmem>>, vector<256x512xf32>,
    %c0_i32_8 = arith.constant 0 : i32
    %10 = arith.cmpi eq, %arg2, %c0_i32_8 : i32
    %11 = arith.extui %10 : i1 to i32
    %c0_i32_9 = arith.constant 0 : i32
    %12 = arith.cmpi ne, %11, %c0_i32_9 : i32
    scf.if %12 {
      %c0_10 = arith.constant 0 : index
      %c0_11 = arith.constant 0 : index
      %13 = vector.load %arg7[%c0_10, %c0_11] : memref<256x512xf32, #tpu.memory_space<vmem>>, vector<256x512xf32>
      %c0_12 = arith.constant 0 : index
      %c0_13 = arith.constant 0 : index
      %14 = vector.load %arg5[%c0_12, %c0_13] : memref<1x512xf32, #tpu.memory_space<vmem>>, vector<1x512xf32>
      %15 = vector.broadcast %14 : vector<1x512xf32> to vector<256x512xf32>
      %16 = arith.addf %13, %15 : vector<256x512xf32>
      %17 = arith.truncf %16 : vector<256x512xf32> to vector<256x512xbf16>
      %c0_14 = arith.constant 0 : index
      %c0_15 = arith.constant 0 : index
      %18 = vector.load %arg6[%c0_14, %c0_15] : memref<256x512xbf16, #tpu.memory_space<vmem>>, vector<256x512xbf16>
      tpu.vector_store %arg6[%c0_14, %c0_15], %17 {strides = array<i32>} : memref<256x512xbf16, #tpu.memory_space<vmem>>, vector<256x512xbf16>,
    } else {
    }
    return
  }
  func.func @transform_0(%arg0: i32, %arg1: i32, %arg2: i32) -> (i32, i32) {
    %c0_i32 = arith.constant 0 : i32
    return %arg0, %arg2 : i32, i32
  }
  func.func @transform_1(%arg0: i32, %arg1: i32, %arg2: i32) -> (i32, i32) {
    %c0_i32 = arith.constant 0 : i32
    return %arg2, %arg1 : i32, i32
  }
  func.func @transform_2(%arg0: i32, %arg1: i32, %arg2: i32) -> (i32, i32) {
    %c0_i32 = arith.constant 0 : i32
    %c0_i32_0 = arith.constant 0 : i32
    return %c0_i32, %arg1 : i32, i32
  }
  func.func @transform_3(%arg0: i32, %arg1: i32, %arg2: i32) -> (i32, i32) {
    %c0_i32 = arith.constant 0 : i32
    return %arg0, %arg1 : i32, i32
  }
}

</mosaic_0001>

<llo_original>
// kernel: tpu_custom_call.1
$region0: #{tpu_custom_call.1}
  #allocation0 [shape = 'u32[]', space=smem, size = 0x4, offset = 0x4, fixed_abs, tag = 'smem constant byte address 0x4 - core index']
  #allocation1 [shape = 'u32[144,128]{1,0:T(1,128)}', space=vmem, size = 0x12000, scoped, tag = 'internal scratch']
  #allocation2 [shape = 'f32[256,512]{1,0:T(8,128)}', space=vmem, size = 0x80000, scoped, tag = 'scratch operand']
  %s0 = inlined_call_operand.hbm [shape: f32[256,256], index: 0, kind: input, shape index: {}]
  %s1 = inlined_call_operand.hbm [shape: bf16[256,512], index: 1, kind: input, shape index: {}]
  %s2 = inlined_call_operand.hbm [shape: f32[1,512], index: 2, kind: input, shape index: {}]
  %s3 = inlined_call_operand.hbm [shape: bf16[256,512], index: 3, kind: output, shape index: {}]
  %s4 = sld [smem:[#allocation0]]
  $region42: #{tpu_custom_call.1} parent=0
    _
  %s6 = ssub.s32 1, %s4
  %s7 = scalar_select 0, %s6, %s4
  $region1: #{tpu_custom_call.1} parent=0
    #allocation3 [shape = 'u8[262144]{0}', space=vmem, size = 0x40000, scoped, tag = 'input window, operand 0, single buffered']
    #allocation4 [shape = 's32[1]{0}', space=sflag, size = 0x4, scoped, tag = 'scoped memory for tpu_custom_call.1']
    #allocation5 [shape = 's32[1]{0}', space=sflag, size = 0x4, scoped, tag = 'scoped memory for tpu_custom_call.1']
    #allocation6 [shape = 'u8[262144]{0}', space=vmem, size = 0x40000, scoped, tag = 'input window, operand 1, single buffered']
    #allocation7 [shape = 's32[1]{0}', space=sflag, size = 0x4, scoped, tag = 'scoped memory for tpu_custom_call.1']
    #allocation8 [shape = 'u8[2048]{0}', space=vmem, size = 0x800, scoped, tag = 'input window, operand 2, single buffered']
    #allocation9 [shape = 'u8[262144]{0}', space=vmem, size = 0x40000, scoped, tag = 'output window, operand 0, single buffered']
    %8 = vsyncpa [#allocation4], 0
    %9 = vsyncpa [#allocation7], 0
    %10 = vsyncpa [#allocation5], 0
    // Predicated region
    $region2: #{tpu_custom_call.1} parent=1 // pred_check
      _
    $region3: #{tpu_custom_call.1} parent=1 // pred_check_branch
      %12 = sbr.rel (0) target = $region5
    $region4: #{tpu_custom_call.1} parent=1 // pred_region
      %s14 = ssub.s32 8192, 8192
      %15 = vsyncadd [#allocation4], %s14
      %s16 = sshll.u32 [#allocation3], 4
      %s17 = int_to_ptr.vmem [resolvable:$true] %s16
      %22 = dma.hbm_to_vmem [thread:$0]  %s0, 8192, %s17, [#allocation4], 256, 256, 16
    $region5: #{tpu_custom_call.1} parent=1 // pred_fallthru
      _
    // Predicated region
    $region6: #{tpu_custom_call.1} parent=1 // pred_check
      _
    $region7: #{tpu_custom_call.1} parent=1 // pred_check_branch
      %24 = sbr.rel (0) target = $region9
    $region8: #{tpu_custom_call.1} parent=1 // pred_region
      %s26 = ssub.s32 8192, 8192
      %27 = vsyncadd [#allocation7], %s26
      %s28 = sshll.u32 [#allocation6], 4
      %s29 = int_to_ptr.vmem [resolvable:$true] %s28
      %34 = dma.hbm_to_vmem [thread:$0]  %s1, 8192, %s29, [#allocation7], 256, 256, 16
    $region9: #{tpu_custom_call.1} parent=1 // pred_fallthru
      _
    // Predicated region
    $region10: #{tpu_custom_call.1} parent=1 // pred_check
      _
    $region11: #{tpu_custom_call.1} parent=1 // pred_check_branch
      %36 = sbr.rel (0) target = $region13
    $region12: #{tpu_custom_call.1} parent=1 // pred_region
      %s38 = ssub.s32 64, 64
      %39 = vsyncadd [#allocation7], %s38
      %s41 = sshll.u32 [#allocation8], 4
      %s42 = int_to_ptr.vmem [resolvable:$true] %s41
      %44 = dma.hbm_to_vmem [thread:$0]  %s2, 64, %s42, [#allocation7]
    $region13: #{tpu_custom_call.1} parent=1 // pred_fallthru
      _
    // Predicated region
    $region14: #{tpu_custom_call.1} parent=1 // pred_check
      _
    $region15: #{tpu_custom_call.1} parent=1 // pred_check_branch
      %46 = sbr.rel (0) target = $region17
    $region16: #{tpu_custom_call.1} parent=1 // pred_region
      %47 = dma.done [#allocation4], 8192
    $region17: #{tpu_custom_call.1} parent=1 // pred_fallthru
      _
    // Predicated region
    $region18: #{tpu_custom_call.1} parent=1 // pred_check
      _
    $region19: #{tpu_custom_call.1} parent=1 // pred_check_branch
      %49 = sbr.rel (0) target = $region21
    $region20: #{tpu_custom_call.1} parent=1 // pred_region
      %50 = dma.done [#allocation7], 8192
    $region21: #{tpu_custom_call.1} parent=1 // pred_fallthru
      _
    // Predicated region
    $region22: #{tpu_custom_call.1} parent=1 // pred_check
      _
    $region23: #{tpu_custom_call.1} parent=1 // pred_check_branch
      %52 = sbr.rel (0) target = $region25
    $region24: #{tpu_custom_call.1} parent=1 // pred_region
      %53 = dma.done [#allocation7], 64
    $region25: #{tpu_custom_call.1} parent=1 // pred_fallthru
      _
    %p54 = scmp.eq.s32.totalorder 0, 0
    // Predicated region
    $region26: #{tpu_custom_call.1} parent=1 // pred_check
      %p55 = pneg %p54
    $region27: #{tpu_custom_call.1} parent=1 // pred_check_branch
      %57 = sbr.rel (%p55) target = $region29
    $region28: #{tpu_custom_call.1} parent=1 // pred_region
      %58 = vst [vmem:[#allocation2] sm:$0xff] 0.0
      %59 = vst [vmem:[#allocation2 + $0x8] sm:$0xff] 0.0
      %60 = vst [vmem:[#allocation2 + $0x10] sm:$0xff] 0.0
      %61 = vst [vmem:[#allocation2 + $0x18] sm:$0xff] 0.0
      %62 = vst [vmem:[#allocation2 + $0x20] sm:$0xff] 0.0
      %63 = vst [vmem:[#allocation2 + $0x28] sm:$0xff] 0.0
      %64 = vst [vmem:[#allocation2 + $0x30] sm:$0xff] 0.0
      %65 = vst [vmem:[#allocation2 + $0x38] sm:$0xff] 0.0
      %66 = vst [vmem:[#allocation2 + $0x40] sm:$0xff] 0.0
      %67 = vst [vmem:[#allocation2 + $0x48] sm:$0xff] 0.0
      %68 = vst [vmem:[#allocation2 + $0x50] sm:$0xff] 0.0
      %69 = vst [vmem:[#allocation2 + $0x58] sm:$0xff] 0.0
      %70 = vst [vmem:[#allocation2 + $0x60] sm:$0xff] 0.0
      %71 = vst [vmem:[#allocation2 + $0x68] sm:$0xff] 0.0
      %72 = vst [vmem:[#allocation2 + $0x70] sm:$0xff] 0.0
      %73 = vst [vmem:[#allocation2 + $0x78] sm:$0xff] 0.0
      %74 = vst [vmem:[#allocation2 + $0x80] sm:$0xff] 0.0
      %75 = vst [vmem:[#allocation2 + $0x88] sm:$0xff] 0.0
      %76 = vst [vmem:[#allocation2 + $0x90] sm:$0xff] 0.0
      %77 = vst [vmem:[#allocation2 + $0x98] sm:$0xff] 0.0
      %78 = vst [vmem:[#allocation2 + $0xa0] sm:$0xff] 0.0
      %79 = vst [vmem:[#allocation2 + $0xa8] sm:$0xff] 0.0
      %80 = vst [vmem:[#allocation2 + $0xb0] sm:$0xff] 0.0
      %81 = vst [vmem:[#allocation2 + $0xb8] sm:$0xff] 0.0
      %82 = vst [vmem:[#allocation2 + $0xc0] sm:$0xff] 0.0
      %83 = vst [vmem:[#allocation2 + $0xc8] sm:$0xff] 0.0
      %84 = vst [vmem:[#allocation2 + $0xd0] sm:$0xff] 0.0
      %85 = vst [vmem:[#allocation2 + $0xd8] sm:$0xff] 0.0
      %86 = vst [vmem:[#allocation2 + $0xe0] sm:$0xff] 0.0
      %87 = vst [vmem:[#allocation2 + $0xe8] sm:$0xff] 0.0
      %88 = vst [vmem:[#allocation2 + $0xf0] sm:$0xff] 0.0
      %89 = vst [vmem:[#allocation2 + $0xf8] sm:$0xff] 0.0
      %90 = vst [vmem:[#allocation2 + $0x100] sm:$0xff] 0.0
      %91 = vst [vmem:[#allocation2 + $0x108] sm:$0xff] 0.0
      %92 = vst [vmem:[#allocation2 + $0x110] sm:$0xff] 0.0
      %93 = vst [vmem:[#allocation2 + $0x118] sm:$0xff] 0.0
      %94 = vst [vmem:[#allocation2 + $0x120] sm:$0xff] 0.0
      %95 = vst [vmem:[#allocation2 + $0x128] sm:$0xff] 0.0
      %96 = vst [vmem:[#allocation2 + $0x130] sm:$0xff] 0.0
      %97 = vst [vmem:[#allocation2 + $0x138] sm:$0xff] 0.0
      %98 = vst [vmem:[#allocation2 + $0x140] sm:$0xff] 0.0
      %99 = vst [vmem:[#allocation2 + $0x148] sm:$0xff] 0.0
      %100 = vst [vmem:[#allocation2 + $0x150] sm:$0xff] 0.0
      %101 = vst [vmem:[#allocation2 + $0x158] sm:$0xff] 0.0
      %102 = vst [vmem:[#allocation2 + $0x160] sm:$0xff] 0.0
      %103 = vst [vmem:[#allocation2 + $0x168] sm:$0xff] 0.0
      %104 = vst [vmem:[#allocation2 + $0x170] sm:$0xff] 0.0
      %105 = vst [vmem:[#allocation2 + $0x178] sm:$0xff] 0.0
      %106 = vst [vmem:[#allocation2 + $0x180] sm:$0xff] 0.0
      %107 = vst [vmem:[#allocation2 + $0x188] sm:$0xff] 0.0
      %108 = vst [vmem:[#allocation2 + $0x190] sm:$0xff] 0.0
      %109 = vst [vmem:[#allocation2 + $0x198] sm:$0xff] 0.0
      %110 = vst [vmem:[#allocation2 + $0x1a0] sm:$0xff] 0.0
      %111 = vst [vmem:[#allocation2 + $0x1a8] sm:$0xff] 0.0
      %112 = vst [vmem:[#allocation2 + $0x1b0] sm:$0xff] 0.0
      %113 = vst [vmem:[#allocation2 + $0x1b8] sm:$0xff] 0.0
      %114 = vst [vmem:[#allocation2 + $0x1c0] sm:$0xff] 0.0
      %115 = vst [vmem:[#allocation2 + $0x1c8] sm:$0xff] 0.0
      %116 = vst [vmem:[#allocation2 + $0x1d0] sm:$0xff] 0.0
      %117 = vst [vmem:[#allocation2 + $0x1d8] sm:$0xff] 0.0
      %118 = vst [vmem:[#allocation2 + $0x1e0] sm:$0xff] 0.0
      %119 = vst [vmem:[#allocation2 + $0x1e8] sm:$0xff] 0.0
      %120 = vst [vmem:[#allocation2 + $0x1f0] sm:$0xff] 0.0
      %121 = vst [vmem:[#allocation2 + $0x1f8] sm:$0xff] 0.0
      %122 = vst [vmem:[#allocation2 + $0x200] sm:$0xff] 0.0
      %123 = vst [vmem:[#allocation2 + $0x208] sm:$0xff] 0.0
      %124 = vst [vmem:[#allocation2 + $0x210] sm:$0xff] 0.0
      %125 = vst [vmem:[#allocation2 + $0x218] sm:$0xff] 0.0
      %126 = vst [vmem:[#allocation2 + $0x220] sm:$0xff] 0.0
      %127 = vst [vmem:[#allocation2 + $0x228] sm:$0xff] 0.0
      %128 = vst [vmem:[#allocation2 + $0x230] sm:$0xff] 0.0
      %129 = vst [vmem:[#allocation2 + $0x238] sm:$0xff] 0.0
      %130 = vst [vmem:[#allocation2 + $0x240] sm:$0xff] 0.0
      %131 = vst [vmem:[#allocation2 + $0x248] sm:$0xff] 0.0
      %132 = vst [vmem:[#allocation2 + $0x250] sm:$0xff] 0.0
      %133 = vst [vmem:[#allocation2 + $0x258] sm:$0xff] 0.0
      %134 = vst [vmem:[#allocation2 + $0x260] sm:$0xff] 0.0
      %135 = vst [vmem:[#allocation2 + $0x268] sm:$0xff] 0.0
      %136 = vst [vmem:[#allocation2 + $0x270] sm:$0xff] 0.0
      %137 = vst [vmem:[#allocation2 + $0x278] sm:$0xff] 0.0
      %138 = vst [vmem:[#allocation2 + $0x280] sm:$0xff] 0.0
      %139 = vst [vmem:[#allocation2 + $0x288] sm:$0xff] 0.0
      %140 = vst [vmem:[#allocation2 + $0x290] sm:$0xff] 0.0
      %141 = vst [vmem:[#allocation2 + $0x298] sm:$0xff] 0.0
      %142 = vst [vmem:[#allocation2 + $0x2a0] sm:$0xff] 0.0
      %143 = vst [vmem:[#allocation2 + $0x2a8] sm:$0xff] 0.0
      %144 = vst [vmem:[#allocation2 + $0x2b0] sm:$0xff] 0.0
      %145 = vst [vmem:[#allocation2 + $0x2b8] sm:$0xff] 0.0
      %146 = vst [vmem:[#allocation2 + $0x2c0] sm:$0xff] 0.0
      %147 = vst [vmem:[#allocation2 + $0x2c8] sm:$0xff] 0.0
      %148 = vst [vmem:[#allocation2 + $0x2d0] sm:$0xff] 0.0
      %149 = vst [vmem:[#allocation2 + $0x2d8] sm:$0xff] 0.0
      %150 = vst [vmem:[#allocation2 + $0x2e0] sm:$0xff] 0.0
      %151 = vst [vmem:[#allocation2 + $0x2e8] sm:$0xff] 0.0
      %152 = vst [vmem:[#allocation2 + $0x2f0] sm:$0xff] 0.0
      %153 = vst [vmem:[#allocation2 + $0x2f8] sm:$0xff] 0.0
      %154 = vst [vmem:[#allocation2 + $0x300] sm:$0xff] 0.0
      %155 = vst [vmem:[#allocation2 + $0x308] sm:$0xff] 0.0
      %156 = vst [vmem:[#allocation2 + $0x310] sm:$0xff] 0.0
      %157 = vst [vmem:[#allocation2 + $0x318] sm:$0xff] 0.0
      %158 = vst [vmem:[#allocation2 + $0x320] sm:$0xff] 0.0
      %159 = vst [vmem:[#allocation2 + $0x328] sm:$0xff] 0.0
      %160 = vst [vmem:[#allocation2 + $0x330] sm:$0xff] 0.0
      %161 = vst [vmem:[#allocation2 + $0x338] sm:$0xff] 0.0
      %162 = vst [vmem:[#allocation2 + $0x340] sm:$0xff] 0.0
      %163 = vst [vmem:[#allocation2 + $0x348] sm:$0xff] 0.0
      %164 = vst [vmem:[#allocation2 + $0x350] sm:$0xff] 0.0
      %165 = vst [vmem:[#allocation2 + $0x358] sm:$0xff] 0.0
      %166 = vst [vmem:[#allocation2 + $0x360] sm:$0xff] 0.0
      %167 = vst [vmem:[#allocation2 + $0x368] sm:$0xff] 0.0
      %168 = vst [vmem:[#allocation2 + $0x370] sm:$0xff] 0.0
      %169 = vst [vmem:[#allocation2 + $0x378] sm:$0xff] 0.0
      %170 = vst [vmem:[#allocation2 + $0x380] sm:$0xff] 0.0
      %171 = vst [vmem:[#allocation2 + $0x388] sm:$0xff] 0.0
      %172 = vst [vmem:[#allocation2 + $0x390] sm:$0xff] 0.0
      %173 = vst [vmem:[#allocation2 + $0x398] sm:$0xff] 0.0
      %174 = vst [vmem:[#allocation2 + $0x3a0] sm:$0xff] 0.0
      %175 = vst [vmem:[#allocation2 + $0x3a8] sm:$0xff] 0.0
      %176 = vst [vmem:[#allocation2 + $0x3b0] sm:$0xff] 0.0
      %177 = vst [vmem:[#allocation2 + $0x3b8] sm:$0xff] 0.0
      %178 = vst [vmem:[#allocation2 + $0x3c0] sm:$0xff] 0.0
      %179 = vst [vmem:[#allocation2 + $0x3c8] sm:$0xff] 0.0
      %180 = vst [vmem:[#allocation2 + $0x3d0] sm:$0xff] 0.0
      %181 = vst [vmem:[#allocation2 + $0x3d8] sm:$0xff] 0.0
      %182 = vst [vmem:[#allocation2 + $0x3e0] sm:$0xff] 0.0
      %183 = vst [vmem:[#allocation2 + $0x3e8] sm:$0xff] 0.0
      %184 = vst [vmem:[#allocation2 + $0x3f0] sm:$0xff] 0.0
      %185 = vst [vmem:[#allocation2 + $0x3f8] sm:$0xff] 0.0
    $region29: #{tpu_custom_call.1} parent=1 // pred_fallthru
      _
    %v186 = vld [vmem:[#allocation2] sm:$0xff]
    %v187 = vld [vmem:[#allocation2 + $0x8] sm:$0xff]
    %v188 = vld [vmem:[#allocation2 + $0x10] sm:$0xff]
    %v189 = vld [vmem:[#allocation2 + $0x18] sm:$0xff]
    %v190 = vld [vmem:[#allocation2 + $0x20] sm:$0xff]
    %v191 = vld [vmem:[#allocation2 + $0x28] sm:$0xff]
    %v192 = vld [vmem:[#allocation2 + $0x30] sm:$0xff]
    %v193 = vld [vmem:[#allocation2 + $0x38] sm:$0xff]
    %v194 = vld [vmem:[#allocation2 + $0x40] sm:$0xff]
    %v195 = vld [vmem:[#allocation2 + $0x48] sm:$0xff]
    %v196 = vld [vmem:[#allocation2 + $0x50] sm:$0xff]
    %v197 = vld [vmem:[#allocation2 + $0x58] sm:$0xff]
    %v198 = vld [vmem:[#allocation2 + $0x60] sm:$0xff]
    %v199 = vld [vmem:[#allocation2 + $0x68] sm:$0xff]
    %v200 = vld [vmem:[#allocation2 + $0x70] sm:$0xff]
    %v201 = vld [vmem:[#allocation2 + $0x78] sm:$0xff]
    %v202 = vld [vmem:[#allocation2 + $0x80] sm:$0xff]
    %v203 = vld [vmem:[#allocation2 + $0x88] sm:$0xff]
    %v204 = vld [vmem:[#allocation2 + $0x90] sm:$0xff]
    %v205 = vld [vmem:[#allocation2 + $0x98] sm:$0xff]
    %v206 = vld [vmem:[#allocation2 + $0xa0] sm:$0xff]
    %v207 = vld [vmem:[#allocation2 + $0xa8] sm:$0xff]
    %v208 = vld [vmem:[#allocation2 + $0xb0] sm:$0xff]
    %v209 = vld [vmem:[#allocation2 + $0xb8] sm:$0xff]
    %v210 = vld [vmem:[#allocation2 + $0xc0] sm:$0xff]
    %v211 = vld [vmem:[#allocation2 + $0xc8] sm:$0xff]
    %v212 = vld [vmem:[#allocation2 + $0xd0] sm:$0xff]
    %v213 = vld [vmem:[#allocation2 + $0xd8] sm:$0xff]
    %v214 = vld [vmem:[#allocation2 + $0xe0] sm:$0xff]
    %v215 = vld [vmem:[#allocation2 + $0xe8] sm:$0xff]
    %v216 = vld [vmem:[#allocation2 + $0xf0] sm:$0xff]
    %v217 = vld [vmem:[#allocation2 + $0xf8] sm:$0xff]
    %v218 = vld [vmem:[#allocation2 + $0x100] sm:$0xff]
    %v219 = vld [vmem:[#allocation2 + $0x108] sm:$0xff]
    %v220 = vld [vmem:[#allocation2 + $0x110] sm:$0xff]
    %v221 = vld [vmem:[#allocation2 + $0x118] sm:$0xff]
    %v222 = vld [vmem:[#allocation2 + $0x120] sm:$0xff]
    %v223 = vld [vmem:[#allocation2 + $0x128] sm:$0xff]
    %v224 = vld [vmem:[#allocation2 + $0x130] sm:$0xff]
    %v225 = vld [vmem:[#allocation2 + $0x138] sm:$0xff]
    %v226 = vld [vmem:[#allocation2 + $0x140] sm:$0xff]
    %v227 = vld [vmem:[#allocation2 + $0x148] sm:$0xff]
    %v228 = vld [vmem:[#allocation2 + $0x150] sm:$0xff]
    %v229 = vld [vmem:[#allocation2 + $0x158] sm:$0xff]
    %v230 = vld [vmem:[#allocation2 + $0x160] sm:$0xff]
    %v231 = vld [vmem:[#allocation2 + $0x168] sm:$0xff]
    %v232 = vld [vmem:[#allocation2 + $0x170] sm:$0xff]
    %v233 = vld [vmem:[#allocation2 + $0x178] sm:$0xff]
    %v234 = vld [vmem:[#allocation2 + $0x180] sm:$0xff]
    %v235 = vld [vmem:[#allocation2 + $0x188] sm:$0xff]
    %v236 = vld [vmem:[#allocation2 + $0x190] sm:$0xff]
    %v237 = vld [vmem:[#allocation2 + $0x198] sm:$0xff]
    %v238 = vld [vmem:[#allocation2 + $0x1a0] sm:$0xff]
    %v239 = vld [vmem:[#allocation2 + $0x1a8] sm:$0xff]
    %v240 = vld [vmem:[#allocation2 + $0x1b0] sm:$0xff]
    %v241 = vld [vmem:[#allocation2 + $0x1b8] sm:$0xff]
    %v242 = vld [vmem:[#allocation2 + $0x1c0] sm:$0xff]
    %v243 = vld [vmem:[#allocation2 + $0x1c8] sm:$0xff]
    %v244 = vld [vmem:[#allocation2 + $0x1d0] sm:$0xff]
    %v245 = vld [vmem:[#allocation2 + $0x1d8] sm:$0xff]
    %v246 = vld [vmem:[#allocation2 + $0x1e0] sm:$0xff]
    %v247 = vld [vmem:[#allocation2 + $0x1e8] sm:$0xff]
    %v248 = vld [vmem:[#allocation2 + $0x1f0] sm:$0xff]
    %v249 = vld [vmem:[#allocation2 + $0x1f8] sm:$0xff]
    %v250 = vld [vmem:[#allocation2 + $0x200] sm:$0xff]
    %v251 = vld [vmem:[#allocation2 + $0x208] sm:$0xff]
    %v252 = vld [vmem:[#allocation2 + $0x210] sm:$0xff]
    %v253 = vld [vmem:[#allocation2 + $0x218] sm:$0xff]
    %v254 = vld [vmem:[#allocation2 + $0x220] sm:$0xff]
    %v255 = vld [vmem:[#allocation2 + $0x228] sm:$0xff]
    %v256 = vld [vmem:[#allocation2 + $0x230] sm:$0xff]
    %v257 = vld [vmem:[#allocation2 + $0x238] sm:$0xff]
    %v258 = vld [vmem:[#allocation2 + $0x240] sm:$0xff]
    %v259 = vld [vmem:[#allocation2 + $0x248] sm:$0xff]
    %v260 = vld [vmem:[#allocation2 + $0x250] sm:$0xff]
    %v261 = vld [vmem:[#allocation2 + $0x258] sm:$0xff]
    %v262 = vld [vmem:[#allocation2 + $0x260] sm:$0xff]
    %v263 = vld [vmem:[#allocation2 + $0x268] sm:$0xff]
    %v264 = vld [vmem:[#allocation2 + $0x270] sm:$0xff]
    %v265 = vld [vmem:[#allocation2 + $0x278] sm:$0xff]
    %v266 = vld [vmem:[#allocation2 + $0x280] sm:$0xff]
    %v267 = vld [vmem:[#allocation2 + $0x288] sm:$0xff]
    %v268 = vld [vmem:[#allocation2 + $0x290] sm:$0xff]
    %v269 = vld [vmem:[#allocation2 + $0x298] sm:$0xff]
    %v270 = vld [vmem:[#allocation2 + $0x2a0] sm:$0xff]
    %v271 = vld [vmem:[#allocation2 + $0x2a8] sm:$0xff]
    %v272 = vld [vmem:[#allocation2 + $0x2b0] sm:$0xff]
    %v273 = vld [vmem:[#allocation2 + $0x2b8] sm:$0xff]
    %v274 = vld [vmem:[#allocation2 + $0x2c0] sm:$0xff]
    %v275 = vld [vmem:[#allocation2 + $0x2c8] sm:$0xff]
    %v276 = vld [vmem:[#allocation2 + $0x2d0] sm:$0xff]
    %v277 = vld [vmem:[#allocation2 + $0x2d8] sm:$0xff]
    %v278 = vld [vmem:[#allocation2 + $0x2e0] sm:$0xff]
    %v279 = vld [vmem:[#allocation2 + $0x2e8] sm:$0xff]
    %v280 = vld [vmem:[#allocation2 + $0x2f0] sm:$0xff]
    %v281 = vld [vmem:[#allocation2 + $0x2f8] sm:$0xff]
    %v282 = vld [vmem:[#allocation2 + $0x300] sm:$0xff]
    %v283 = vld [vmem:[#allocation2 + $0x308] sm:$0xff]
    %v284 = vld [vmem:[#allocation2 + $0x310] sm:$0xff]
    %v285 = vld [vmem:[#allocation2 + $0x318] sm:$0xff]
    %v286 = vld [vmem:[#allocation2 + $0x320] sm:$0xff]
    %v287 = vld [vmem:[#allocation2 + $0x328] sm:$0xff]
    %v288 = vld [vmem:[#allocation2 + $0x330] sm:$0xff]
    %v289 = vld [vmem:[#allocation2 + $0x338] sm:$0xff]
    %v290 = vld [vmem:[#allocation2 + $0x340] sm:$0xff]
    %v291 = vld [vmem:[#allocation2 + $0x348] sm:$0xff]
    %v292 = vld [vmem:[#allocation2 + $0x350] sm:$0xff]
    %v293 = vld [vmem:[#allocation2 + $0x358] sm:$0xff]
    %v294 = vld [vmem:[#allocation2 + $0x360] sm:$0xff]
    %v295 = vld [vmem:[#allocation2 + $0x368] sm:$0xff]
    %v296 = vld [vmem:[#allocation2 + $0x370] sm:$0xff]
    %v297 = vld [vmem:[#allocation2 + $0x378] sm:$0xff]
    %v298 = vld [vmem:[#allocation2 + $0x380] sm:$0xff]
    %v299 = vld [vmem:[#allocation2 + $0x388] sm:$0xff]
    %v300 = vld [vmem:[#allocation2 + $0x390] sm:$0xff]
    %v301 = vld [vmem:[#allocation2 + $0x398] sm:$0xff]
    %v302 = vld [vmem:[#allocation2 + $0x3a0] sm:$0xff]
    %v303 = vld [vmem:[#allocation2 + $0x3a8] sm:$0xff]
    %v304 = vld [vmem:[#allocation2 + $0x3b0] sm:$0xff]
    %v305 = vld [vmem:[#allocation2 + $0x3b8] sm:$0xff]
    %v306 = vld [vmem:[#allocation2 + $0x3c0] sm:$0xff]
    %v307 = vld [vmem:[#allocation2 + $0x3c8] sm:$0xff]
    %v308 = vld [vmem:[#allocation2 + $0x3d0] sm:$0xff]
    %v309 = vld [vmem:[#allocation2 + $0x3d8] sm:$0xff]
    %v310 = vld [vmem:[#allocation2 + $0x3e0] sm:$0xff]
    %v311 = vld [vmem:[#allocation2 + $0x3e8] sm:$0xff]
    %v312 = vld [vmem:[#allocation2 + $0x3f0] sm:$0xff]
    %v313 = vld [vmem:[#allocation2 + $0x3f8] sm:$0xff]
    %v314 = vld [vmem:[#allocation3] sm:$0xff]
    %v315 = vld [vmem:[#allocation3 + $0x8] sm:$0xff]
    %v316 = vld [vmem:[#allocation3 + $0x10] sm:$0xff]
    %v317 = vld [vmem:[#allocation3 + $0x18] sm:$0xff]
    %v318 = vld [vmem:[#allocation3 + $0x20] sm:$0xff]
    %v319 = vld [vmem:[#allocation3 + $0x28] sm:$0xff]
    %v320 = vld [vmem:[#allocation3 + $0x30] sm:$0xff]
    %v321 = vld [vmem:[#allocation3 + $0x38] sm:$0xff]
    %v322 = vld [vmem:[#allocation3 + $0x40] sm:$0xff]
    %v323 = vld [vmem:[#allocation3 + $0x48] sm:$0xff]
    %v324 = vld [vmem:[#allocation3 + $0x50] sm:$0xff]
    %v325 = vld [vmem:[#allocation3 + $0x58] sm:$0xff]
    %v326 = vld [vmem:[#allocation3 + $0x60] sm:$0xff]
    %v327 = vld [vmem:[#allocation3 + $0x68] sm:$0xff]
    %v328 = vld [vmem:[#allocation3 + $0x70] sm:$0xff]
    %v329 = vld [vmem:[#allocation3 + $0x78] sm:$0xff]
    %v330 = vld [vmem:[#allocation3 + $0x80] sm:$0xff]
    %v331 = vld [vmem:[#allocation3 + $0x88] sm:$0xff]
    %v332 = vld [vmem:[#allocation3 + $0x90] sm:$0xff]
    %v333 = vld [vmem:[#allocation3 + $0x98] sm:$0xff]
    %v334 = vld [vmem:[#allocation3 + $0xa0] sm:$0xff]
    %v335 = vld [vmem:[#allocation3 + $0xa8] sm:$0xff]
    %v336 = vld [vmem:[#allocation3 + $0xb0] sm:$0xff]
    %v337 = vld [vmem:[#allocation3 + $0xb8] sm:$0xff]
    %v338 = vld [vmem:[#allocation3 + $0xc0] sm:$0xff]
    %v339 = vld [vmem:[#allocation3 + $0xc8] sm:$0xff]
    %v340 = vld [vmem:[#allocation3 + $0xd0] sm:$0xff]
    %v341 = vld [vmem:[#allocation3 + $0xd8] sm:$0xff]
    %v342 = vld [vmem:[#allocation3 + $0xe0] sm:$0xff]
    %v343 = vld [vmem:[#allocation3 + $0xe8] sm:$0xff]
    %v344 = vld [vmem:[#allocation3 + $0xf0] sm:$0xff]
    %v345 = vld [vmem:[#allocation3 + $0xf8] sm:$0xff]
    %v346 = vld [vmem:[#allocation3 + $0x100] sm:$0xff]
    %v347 = vld [vmem:[#allocation3 + $0x108] sm:$0xff]
    %v348 = vld [vmem:[#allocation3 + $0x110] sm:$0xff]
    %v349 = vld [vmem:[#allocation3 + $0x118] sm:$0xff]
    %v350 = vld [vmem:[#allocation3 + $0x120] sm:$0xff]
    %v351 = vld [vmem:[#allocation3 + $0x128] sm:$0xff]
    %v352 = vld [vmem:[#allocation3 + $0x130] sm:$0xff]
    %v353 = vld [vmem:[#allocation3 + $0x138] sm:$0xff]
    %v354 = vld [vmem:[#allocation3 + $0x140] sm:$0xff]
    %v355 = vld [vmem:[#allocation3 + $0x148] sm:$0xff]
    %v356 = vld [vmem:[#allocation3 + $0x150] sm:$0xff]
    %v357 = vld [vmem:[#allocation3 + $0x158] sm:$0xff]
    %v358 = vld [vmem:[#allocation3 + $0x160] sm:$0xff]
    %v359 = vld [vmem:[#allocation3 + $0x168] sm:$0xff]
    %v360 = vld [vmem:[#allocation3 + $0x170] sm:$0xff]
    %v361 = vld [vmem:[#allocation3 + $0x178] sm:$0xff]
    %v362 = vld [vmem:[#allocation3 + $0x180] sm:$0xff]
    %v363 = vld [vmem:[#allocation3 + $0x188] sm:$0xff]
    %v364 = vld [vmem:[#allocation3 + $0x190] sm:$0xff]
    %v365 = vld [vmem:[#allocation3 + $0x198] sm:$0xff]
    %v366 = vld [vmem:[#allocation3 + $0x1a0] sm:$0xff]
    %v367 = vld [vmem:[#allocation3 + $0x1a8] sm:$0xff]
    %v368 = vld [vmem:[#allocation3 + $0x1b0] sm:$0xff]
    %v369 = vld [vmem:[#allocation3 + $0x1b8] sm:$0xff]
    %v370 = vld [vmem:[#allocation3 + $0x1c0] sm:$0xff]
    %v371 = vld [vmem:[#allocation3 + $0x1c8] sm:$0xff]
    %v372 = vld [vmem:[#allocation3 + $0x1d0] sm:$0xff]
    %v373 = vld [vmem:[#allocation3 + $0x1d8] sm:$0xff]
    %v374 = vld [vmem:[#allocation3 + $0x1e0] sm:$0xff]
    %v375 = vld [vmem:[#allocation3 + $0x1e8] sm:$0xff]
    %v376 = vld [vmem:[#allocation3 + $0x1f0] sm:$0xff]
    %v377 = vld [vmem:[#allocation3 + $0x1f8] sm:$0xff]
    %v378 = vpack.c.bf16 %v316, %v314
    %v379 = vpack.c.bf16 %v317, %v315
    %v380 = vpack.c.bf16 %v320, %v318
    %v381 = vpack.c.bf16 %v321, %v319
    %v382 = vpack.c.bf16 %v324, %v322
    %v383 = vpack.c.bf16 %v325, %v323
    %v384 = vpack.c.bf16 %v328, %v326
    %v385 = vpack.c.bf16 %v329, %v327
    %v386 = vpack.c.bf16 %v332, %v330
    %v387 = vpack.c.bf16 %v333, %v331
    %v388 = vpack.c.bf16 %v336, %v334
    %v389 = vpack.c.bf16 %v337, %v335
    %v390 = vpack.c.bf16 %v340, %v338
    %v391 = vpack.c.bf16 %v341, %v339
    %v392 = vpack.c.bf16 %v344, %v342
    %v393 = vpack.c.bf16 %v345, %v343
    %v394 = vpack.c.bf16 %v348, %v346
    %v395 = vpack.c.bf16 %v349, %v347
    %v396 = vpack.c.bf16 %v352, %v350
    %v397 = vpack.c.bf16 %v353, %v351
    %v398 = vpack.c.bf16 %v356, %v354
    %v399 = vpack.c.bf16 %v357, %v355
    %v400 = vpack.c.bf16 %v360, %v358
    %v401 = vpack.c.bf16 %v361, %v359
    %v402 = vpack.c.bf16 %v364, %v362
    %v403 = vpack.c.bf16 %v365, %v363
    %v404 = vpack.c.bf16 %v368, %v366
    %v405 = vpack.c.bf16 %v369, %v367
    %v406 = vpack.c.bf16 %v372, %v370
    %v407 = vpack.c.bf16 %v373, %v371
    %v408 = vpack.c.bf16 %v376, %v374
    %v409 = vpack.c.bf16 %v377, %v375
    %v410 = vld [vmem:[#allocation6] sm:$0xff]
    %v411 = vld [vmem:[#allocation6 + $0x8] sm:$0xff]
    %v412 = vld [vmem:[#allocation6 + $0x10] sm:$0xff]
    %v413 = vld [vmem:[#allocation6 + $0x18] sm:$0xff]
    %v414 = vld [vmem:[#allocation6 + $0x20] sm:$0xff]
    %v415 = vld [vmem:[#allocation6 + $0x28] sm:$0xff]
    %v416 = vld [vmem:[#allocation6 + $0x30] sm:$0xff]
    %v417 = vld [vmem:[#allocation6 + $0x38] sm:$0xff]
    %v418 = vld [vmem:[#allocation6 + $0x40] sm:$0xff]
    %v419 = vld [vmem:[#allocation6 + $0x48] sm:$0xff]
    %v420 = vld [vmem:[#allocation6 + $0x50] sm:$0xff]
    %v421 = vld [vmem:[#allocation6 + $0x58] sm:$0xff]
    %v422 = vld [vmem:[#allocation6 + $0x60] sm:$0xff]
    %v423 = vld [vmem:[#allocation6 + $0x68] sm:$0xff]
    %v424 = vld [vmem:[#allocation6 + $0x70] sm:$0xff]
    %v425 = vld [vmem:[#allocation6 + $0x78] sm:$0xff]
    %v426 = vld [vmem:[#allocation6 + $0x80] sm:$0xff]
    %v427 = vld [vmem:[#allocation6 + $0x88] sm:$0xff]
    %v428 = vld [vmem:[#allocation6 + $0x90] sm:$0xff]
    %v429 = vld [vmem:[#allocation6 + $0x98] sm:$0xff]
    %v430 = vld [vmem:[#allocation6 + $0xa0] sm:$0xff]
    %v431 = vld [vmem:[#allocation6 + $0xa8] sm:$0xff]
    %v432 = vld [vmem:[#allocation6 + $0xb0] sm:$0xff]
    %v433 = vld [vmem:[#allocation6 + $0xb8] sm:$0xff]
    %v434 = vld [vmem:[#allocation6 + $0xc0] sm:$0xff]
    %v435 = vld [vmem:[#allocation6 + $0xc8] sm:$0xff]
    %v436 = vld [vmem:[#allocation6 + $0xd0] sm:$0xff]
    %v437 = vld [vmem:[#allocation6 + $0xd8] sm:$0xff]
    %v438 = vld [vmem:[#allocation6 + $0xe0] sm:$0xff]
    %v439 = vld [vmem:[#allocation6 + $0xe8] sm:$0xff]
    %v440 = vld [vmem:[#allocation6 + $0xf0] sm:$0xff]
    %v441 = vld [vmem:[#allocation6 + $0xf8] sm:$0xff]
    %v442 = vld [vmem:[#allocation6 + $0x100] sm:$0xff]
    %v443 = vld [vmem:[#allocation6 + $0x108] sm:$0xff]
    %v444 = vld [vmem:[#allocation6 + $0x110] sm:$0xff]
    %v445 = vld [vmem:[#allocation6 + $0x118] sm:$0xff]
    %v446 = vld [vmem:[#allocation6 + $0x120] sm:$0xff]
    %v447 = vld [vmem:[#allocation6 + $0x128] sm:$0xff]
    %v448 = vld [vmem:[#allocation6 + $0x130] sm:$0xff]
    %v449 = vld [vmem:[#allocation6 + $0x138] sm:$0xff]
    %v450 = vld [vmem:[#allocation6 + $0x140] sm:$0xff]
    %v451 = vld [vmem:[#allocation6 + $0x148] sm:$0xff]
    %v452 = vld [vmem:[#allocation6 + $0x150] sm:$0xff]
    %v453 = vld [vmem:[#allocation6 + $0x158] sm:$0xff]
    %v454 = vld [vmem:[#allocation6 + $0x160] sm:$0xff]
    %v455 = vld [vmem:[#allocation6 + $0x168] sm:$0xff]
    %v456 = vld [vmem:[#allocation6 + $0x170] sm:$0xff]
    %v457 = vld [vmem:[#allocation6 + $0x178] sm:$0xff]
    %v458 = vld [vmem:[#allocation6 + $0x180] sm:$0xff]
    %v459 = vld [vmem:[#allocation6 + $0x188] sm:$0xff]
    %v460 = vld [vmem:[#allocation6 + $0x190] sm:$0xff]
    %v461 = vld [vmem:[#allocation6 + $0x198] sm:$0xff]
    %v462 = vld [vmem:[#allocation6 + $0x1a0] sm:$0xff]
    %v463 = vld [vmem:[#allocation6 + $0x1a8] sm:$0xff]
    %v464 = vld [vmem:[#allocation6 + $0x1b0] sm:$0xff]
    %v465 = vld [vmem:[#allocation6 + $0x1b8] sm:$0xff]
    %v466 = vld [vmem:[#allocation6 + $0x1c0] sm:$0xff]
    %v467 = vld [vmem:[#allocation6 + $0x1c8] sm:$0xff]
    %v468 = vld [vmem:[#allocation6 + $0x1d0] sm:$0xff]
    %v469 = vld [vmem:[#allocation6 + $0x1d8] sm:$0xff]
    %v470 = vld [vmem:[#allocation6 + $0x1e0] sm:$0xff]
    %v471 = vld [vmem:[#allocation6 + $0x1e8] sm:$0xff]
    %v472 = vld [vmem:[#allocation6 + $0x1f0] sm:$0xff]
    %v473 = vld [vmem:[#allocation6 + $0x1f8] sm:$0xff]
    %v538 = vunpack.c.l.b16 %v410
    %v539 = vunpack.c.h.b16 %v410
    %v540 = vunpack.c.l.b16 %v411
    %v541 = vunpack.c.h.b16 %v411
    %v542 = vunpack.c.l.b16 %v412
    %v543 = vunpack.c.h.b16 %v412
    %v544 = vunpack.c.l.b16 %v413
    %v545 = vunpack.c.h.b16 %v413
    %v546 = vunpack.c.l.b16 %v414
    %v547 = vunpack.c.h.b16 %v414
    %v548 = vunpack.c.l.b16 %v415
    %v549 = vunpack.c.h.b16 %v415
    %v550 = vunpack.c.l.b16 %v416
    %v551 = vunpack.c.h.b16 %v416
    %v552 = vunpack.c.l.b16 %v417
    %v553 = vunpack.c.h.b16 %v417
    %v554 = vunpack.c.l.b16 %v418
    %v555 = vunpack.c.h.b16 %v418
    %v556 = vunpack.c.l.b16 %v419
    %v557 = vunpack.c.h.b16 %v419
    %v558 = vunpack.c.l.b16 %v420
    %v559 = vunpack.c.h.b16 %v420
    %v560 = vunpack.c.l.b16 %v421
    %v561 = vunpack.c.h.b16 %v421
    %v562 = vunpack.c.l.b16 %v422
    %v563 = vunpack.c.h.b16 %v422
    %v564 = vunpack.c.l.b16 %v423
    %v565 = vunpack.c.h.b16 %v423
    %v566 = vunpack.c.l.b16 %v424
    %v567 = vunpack.c.h.b16 %v424
    %v568 = vunpack.c.l.b16 %v425
    %v569 = vunpack.c.h.b16 %v425
    %v570 = vunpack.c.l.b16 %v426
    %v571 = vunpack.c.h.b16 %v426
    %v572 = vunpack.c.l.b16 %v427
    %v573 = vunpack.c.h.b16 %v427
    %v574 = vunpack.c.l.b16 %v428
    %v575 = vunpack.c.h.b16 %v428
    %v576 = vunpack.c.l.b16 %v429
    %v577 = vunpack.c.h.b16 %v429
    %v578 = vunpack.c.l.b16 %v430
    %v579 = vunpack.c.h.b16 %v430
    %v580 = vunpack.c.l.b16 %v431
    %v581 = vunpack.c.h.b16 %v431
    %v582 = vunpack.c.l.b16 %v432
    %v583 = vunpack.c.h.b16 %v432
    %v584 = vunpack.c.l.b16 %v433
    %v585 = vunpack.c.h.b16 %v433
    %v586 = vunpack.c.l.b16 %v434
    %v587 = vunpack.c.h.b16 %v434
    %v588 = vunpack.c.l.b16 %v435
    %v589 = vunpack.c.h.b16 %v435
    %v590 = vunpack.c.l.b16 %v436
    %v591 = vunpack.c.h.b16 %v436
    %v592 = vunpack.c.l.b16 %v437
    %v593 = vunpack.c.h.b16 %v437
    %v594 = vunpack.c.l.b16 %v438
    %v595 = vunpack.c.h.b16 %v438
    %v596 = vunpack.c.l.b16 %v439
    %v597 = vunpack.c.h.b16 %v439
    %v598 = vunpack.c.l.b16 %v440
    %v599 = vunpack.c.h.b16 %v440
    %v600 = vunpack.c.l.b16 %v441
    %v601 = vunpack.c.h.b16 %v441
    %v602 = vunpack.c.l.b16 %v442
    %v603 = vunpack.c.h.b16 %v442
    %v604 = vunpack.c.l.b16 %v443
    %v605 = vunpack.c.h.b16 %v443
    %v606 = vunpack.c.l.b16 %v444
    %v607 = vunpack.c.h.b16 %v444
    %v608 = vunpack.c.l.b16 %v445
    %v609 = vunpack.c.h.b16 %v445
    %v610 = vunpack.c.l.b16 %v446
    %v611 = vunpack.c.h.b16 %v446
    %v612 = vunpack.c.l.b16 %v447
    %v613 = vunpack.c.h.b16 %v447
    %v614 = vunpack.c.l.b16 %v448
    %v615 = vunpack.c.h.b16 %v448
    %v616 = vunpack.c.l.b16 %v449
    %v617 = vunpack.c.h.b16 %v449
    %v618 = vunpack.c.l.b16 %v450
    %v619 = vunpack.c.h.b16 %v450
    %v620 = vunpack.c.l.b16 %v451
    %v621 = vunpack.c.h.b16 %v451
    %v622 = vunpack.c.l.b16 %v452
    %v623 = vunpack.c.h.b16 %v452
    %v624 = vunpack.c.l.b16 %v453
    %v625 = vunpack.c.h.b16 %v453
    %v626 = vunpack.c.l.b16 %v454
    %v627 = vunpack.c.h.b16 %v454
    %v628 = vunpack.c.l.b16 %v455
    %v629 = vunpack.c.h.b16 %v455
    %v630 = vunpack.c.l.b16 %v456
    %v631 = vunpack.c.h.b16 %v456
    %v632 = vunpack.c.l.b16 %v457
    %v633 = vunpack.c.h.b16 %v457
    %v634 = vunpack.c.l.b16 %v458
    %v635 = vunpack.c.h.b16 %v458
    %v636 = vunpack.c.l.b16 %v459
    %v637 = vunpack.c.h.b16 %v459
    %v638 = vunpack.c.l.b16 %v460
    %v639 = vunpack.c.h.b16 %v460
    %v640 = vunpack.c.l.b16 %v461
    %v641 = vunpack.c.h.b16 %v461
    %v642 = vunpack.c.l.b16 %v462
    %v643 = vunpack.c.h.b16 %v462
    %v644 = vunpack.c.l.b16 %v463
    %v645 = vunpack.c.h.b16 %v463
    %v646 = vunpack.c.l.b16 %v464
    %v647 = vunpack.c.h.b16 %v464
    %v648 = vunpack.c.l.b16 %v465
    %v649 = vunpack.c.h.b16 %v465
    %v650 = vunpack.c.l.b16 %v466
    %v651 = vunpack.c.h.b16 %v466
    %v652 = vunpack.c.l.b16 %v467
    %v653 = vunpack.c.h.b16 %v467
    %v654 = vunpack.c.l.b16 %v468
    %v655 = vunpack.c.h.b16 %v468
    %v656 = vunpack.c.l.b16 %v469
    %v657 = vunpack.c.h.b16 %v469
    %v658 = vunpack.c.l.b16 %v470
    %v659 = vunpack.c.h.b16 %v470
    %v660 = vunpack.c.l.b16 %v471
    %v661 = vunpack.c.h.b16 %v471
    %v662 = vunpack.c.l.b16 %v472
    %v663 = vunpack.c.h.b16 %v472
    %v664 = vunpack.c.l.b16 %v473
    %v665 = vunpack.c.h.b16 %v473
    %v666 = vpack.c.b16 %v542, %v538
    %v667 = vpack.c.b16 %v543, %v539
    %v668 = vpack.c.b16 %v544, %v540
    %v669 = vpack.c.b16 %v545, %v541
    %v670 = vpack.c.b16 %v550, %v546
    %v671 = vpack.c.b16 %v551, %v547
    %v672 = vpack.c.b16 %v552, %v548
    %v673 = vpack.c.b16 %v553, %v549
    %v674 = vpack.c.b16 %v558, %v554
    %v675 = vpack.c.b16 %v559, %v555
    %v676 = vpack.c.b16 %v560, %v556
    %v677 = vpack.c.b16 %v561, %v557
    %v678 = vpack.c.b16 %v566, %v562
    %v679 = vpack.c.b16 %v567, %v563
    %v680 = vpack.c.b16 %v568, %v564
    %v681 = vpack.c.b16 %v569, %v565
    %v682 = vpack.c.b16 %v574, %v570
    %v683 = vpack.c.b16 %v575, %v571
    %v684 = vpack.c.b16 %v576, %v572
    %v685 = vpack.c.b16 %v577, %v573
    %v686 = vpack.c.b16 %v582, %v578
    %v687 = vpack.c.b16 %v583, %v579
    %v688 = vpack.c.b16 %v584, %v580
    %v689 = vpack.c.b16 %v585, %v581
    %v690 = vpack.c.b16 %v590, %v586
    %v691 = vpack.c.b16 %v591, %v587
    %v692 = vpack.c.b16 %v592, %v588
    %v693 = vpack.c.b16 %v593, %v589
    %v694 = vpack.c.b16 %v598, %v594
    %v695 = vpack.c.b16 %v599, %v595
    %v696 = vpack.c.b16 %v600, %v596
    %v697 = vpack.c.b16 %v601, %v597
    %v698 = vpack.c.b16 %v606, %v602
    %v699 = vpack.c.b16 %v607, %v603
    %v700 = vpack.c.b16 %v608, %v604
    %v701 = vpack.c.b16 %v609, %v605
    %v702 = vpack.c.b16 %v614, %v610
    %v703 = vpack.c.b16 %v615, %v611
    %v704 = vpack.c.b16 %v616, %v612
    %v705 = vpack.c.b16 %v617, %v613
    %v706 = vpack.c.b16 %v622, %v618
    %v707 = vpack.c.b16 %v623, %v619
    %v708 = vpack.c.b16 %v624, %v620
    %v709 = vpack.c.b16 %v625, %v621
    %v710 = vpack.c.b16 %v630, %v626
    %v711 = vpack.c.b16 %v631, %v627
    %v712 = vpack.c.b16 %v632, %v628
    %v713 = vpack.c.b16 %v633, %v629
    %v714 = vpack.c.b16 %v638, %v634
    %v715 = vpack.c.b16 %v639, %v635
    %v716 = vpack.c.b16 %v640, %v636
    %v717 = vpack.c.b16 %v641, %v637
    %v718 = vpack.c.b16 %v646, %v642
    %v719 = vpack.c.b16 %v647, %v643
    %v720 = vpack.c.b16 %v648, %v644
    %v721 = vpack.c.b16 %v649, %v645
    %v722 = vpack.c.b16 %v654, %v650
    %v723 = vpack.c.b16 %v655, %v651
    %v724 = vpack.c.b16 %v656, %v652
    %v725 = vpack.c.b16 %v657, %v653
    %v726 = vpack.c.b16 %v662, %v658
    %v727 = vpack.c.b16 %v663, %v659
    %v728 = vpack.c.b16 %v664, %v660
    %v729 = vpack.c.b16 %v665, %v661
    %794 = vmatprep.subr.bf16.mxu0 %v695
    %795 = vmatpush1.bf16.msra.mxu0 %v694
    %796 = vmatprep.subr.bf16.mxu0 %v691
    %797 = vmatpush1.bf16.msra.mxu0 %v690
    %798 = vmatprep.subr.bf16.mxu0 %v687
    %799 = vmatpush1.bf16.msra.mxu0 %v686
    %800 = vmatprep.subr.bf16.mxu0 %v683
    %801 = vmatpush1.bf16.msra.mxu0 %v682
    %802 = vmatprep.subr.bf16.mxu0 %v679
    %803 = vmatpush1.bf16.msra.mxu0 %v678
    %804 = vmatprep.subr.bf16.mxu0 %v675
    %805 = vmatpush1.bf16.msra.mxu0 %v674
    %806 = vmatprep.subr.bf16.mxu0 %v671
    %807 = vmatpush1.bf16.msra.mxu0 %v670
    %808 = vmatprep.subr.bf16.mxu0 %v667
    %809 = vmatpush1.bf16.msra.mxu0 %v666
    %810 = vmatprep.subr.bf16.mxu0 %v727
    %811 = vmatpush2.bf16.msra.mxu0 %v726
    %812 = vmatprep.subr.bf16.mxu0 %v723
    %813 = vmatpush2.bf16.msra.mxu0 %v722
    %814 = vmatprep.subr.bf16.mxu0 %v719
    %815 = vmatpush2.bf16.msra.mxu0 %v718
    %816 = vmatprep.subr.bf16.mxu0 %v715
    %817 = vmatpush2.bf16.msra.mxu0 %v714
    %818 = vmatprep.subr.bf16.mxu0 %v711
    %819 = vmatpush2.bf16.msra.mxu0 %v710
    %820 = vmatprep.subr.bf16.mxu0 %v707
    %821 = vmatpush2.bf16.msra.mxu0 %v706
    %822 = vmatprep.subr.bf16.mxu0 %v703
    %823 = vmatpush2.bf16.msra.mxu0 %v702
    %824 = vmatprep.subr.bf16.mxu0 %v699
    %825 = vmatpush2.bf16.msra.mxu0 %v698
    %826 = vmatprep.mubr.bf16.mxu0 %v379
    %827 = vmatmul.mubr.bf16.gmra.mxu0 %v378
    %v828 = vpop.f32.mrf.mxu0
    %v829 = vadd.f32 0.0, %v828
    %v830 = vpop.f32.mrf.mxu0
    %v831 = vadd.f32 0.0, %v830
    %v832 = vpop.f32.mrf.mxu0
    %v833 = vadd.f32 0.0, %v832
    %v834 = vpop.f32.mrf.mxu0
    %v835 = vadd.f32 0.0, %v834
    %836 = vmatprep.mubr.bf16.mxu0 %v381
    %837 = vmatmul.mubr.bf16.gmra.mxu0 %v380
    %v838 = vpop.f32.mrf.mxu0
    %v839 = vadd.f32 0.0, %v838
    %v840 = vpop.f32.mrf.mxu0
    %v841 = vadd.f32 0.0, %v840
    %v842 = vpop.f32.mrf.mxu0
    %v843 = vadd.f32 0.0, %v842
    %v844 = vpop.f32.mrf.mxu0
    %v845 = vadd.f32 0.0, %v844
    %846 = vmatprep.mubr.bf16.mxu0 %v383
    %847 = vmatmul.mubr.bf16.gmra.mxu0 %v382
    %v848 = vpop.f32.mrf.mxu0
    %v849 = vadd.f32 0.0, %v848
    %v850 = vpop.f32.mrf.mxu0
    %v851 = vadd.f32 0.0, %v850
    %v852 = vpop.f32.mrf.mxu0
    %v853 = vadd.f32 0.0, %v852
    %v854 = vpop.f32.mrf.mxu0
    %v855 = vadd.f32 0.0, %v854
    %856 = vmatprep.mubr.bf16.mxu0 %v385
    %857 = vmatmul.mubr.bf16.gmra.mxu0 %v384
    %v858 = vpop.f32.mrf.mxu0
    %v859 = vadd.f32 0.0, %v858
    %v860 = vpop.f32.mrf.mxu0
    %v861 = vadd.f32 0.0, %v860
    %v862 = vpop.f32.mrf.mxu0
    %v863 = vadd.f32 0.0, %v862
    %v864 = vpop.f32.mrf.mxu0
    %v865 = vadd.f32 0.0, %v864
    %866 = vmatprep.mubr.bf16.mxu0 %v387
    %867 = vmatmul.mubr.bf16.gmra.mxu0 %v386
    %v868 = vpop.f32.mrf.mxu0
    %v869 = vadd.f32 0.0, %v868
    %v870 = vpop.f32.mrf.mxu0
    %v871 = vadd.f32 0.0, %v870
    %v872 = vpop.f32.mrf.mxu0
    %v873 = vadd.f32 0.0, %v872
    %v874 = vpop.f32.mrf.mxu0
    %v875 = vadd.f32 0.0, %v874
    %876 = vmatprep.mubr.bf16.mxu0 %v389
    %877 = vmatmul.mubr.bf16.gmra.mxu0 %v388
    %v878 = vpop.f32.mrf.mxu0
    %v879 = vadd.f32 0.0, %v878
    %v880 = vpop.f32.mrf.mxu0
    %v881 = vadd.f32 0.0, %v880
    %v882 = vpop.f32.mrf.mxu0
    %v883 = vadd.f32 0.0, %v882
    %v884 = vpop.f32.mrf.mxu0
    %v885 = vadd.f32 0.0, %v884
    %886 = vmatprep.mubr.bf16.mxu0 %v391
    %887 = vmatmul.mubr.bf16.gmra.mxu0 %v390
    %v888 = vpop.f32.mrf.mxu0
    %v889 = vadd.f32 0.0, %v888
    %v890 = vpop.f32.mrf.mxu0
    %v891 = vadd.f32 0.0, %v890
    %v892 = vpop.f32.mrf.mxu0
    %v893 = vadd.f32 0.0, %v892
    %v894 = vpop.f32.mrf.mxu0
    %v895 = vadd.f32 0.0, %v894
    %896 = vmatprep.mubr.bf16.mxu0 %v393
    %897 = vmatmul.mubr.bf16.gmra.mxu0 %v392
    %v898 = vpop.f32.mrf.mxu0
    %v899 = vadd.f32 0.0, %v898
    %v900 = vpop.f32.mrf.mxu0
    %v901 = vadd.f32 0.0, %v900
    %v902 = vpop.f32.mrf.mxu0
    %v903 = vadd.f32 0.0, %v902
    %v904 = vpop.f32.mrf.mxu0
    %v905 = vadd.f32 0.0, %v904
    %906 = vmatprep.mubr.bf16.mxu0 %v395
    %907 = vmatmul.mubr.bf16.gmra.mxu0 %v394
    %v908 = vpop.f32.mrf.mxu0
    %v909 = vadd.f32 0.0, %v908
    %v910 = vpop.f32.mrf.mxu0
    %v911 = vadd.f32 0.0, %v910
    %v912 = vpop.f32.mrf.mxu0
    %v913 = vadd.f32 0.0, %v912
    %v914 = vpop.f32.mrf.mxu0
    %v915 = vadd.f32 0.0, %v914
    %916 = vmatprep.mubr.bf16.mxu0 %v397
    %917 = vmatmul.mubr.bf16.gmra.mxu0 %v396
    %v918 = vpop.f32.mrf.mxu0
    %v919 = vadd.f32 0.0, %v918
    %v920 = vpop.f32.mrf.mxu0
    %v921 = vadd.f32 0.0, %v920
    %v922 = vpop.f32.mrf.mxu0
    %v923 = vadd.f32 0.0, %v922
    %v924 = vpop.f32.mrf.mxu0
    %v925 = vadd.f32 0.0, %v924
    %926 = vmatprep.mubr.bf16.mxu0 %v399
    %927 = vmatmul.mubr.bf16.gmra.mxu0 %v398
    %v928 = vpop.f32.mrf.mxu0
    %v929 = vadd.f32 0.0, %v928
    %v930 = vpop.f32.mrf.mxu0
    %v931 = vadd.f32 0.0, %v930
    %v932 = vpop.f32.mrf.mxu0
    %v933 = vadd.f32 0.0, %v932
    %v934 = vpop.f32.mrf.mxu0
    %v935 = vadd.f32 0.0, %v934
    %936 = vmatprep.mubr.bf16.mxu0 %v401
    %937 = vmatmul.mubr.bf16.gmra.mxu0 %v400
    %v938 = vpop.f32.mrf.mxu0
    %v939 = vadd.f32 0.0, %v938
    %v940 = vpop.f32.mrf.mxu0
    %v941 = vadd.f32 0.0, %v940
    %v942 = vpop.f32.mrf.mxu0
    %v943 = vadd.f32 0.0, %v942
    %v944 = vpop.f32.mrf.mxu0
    %v945 = vadd.f32 0.0, %v944
    %946 = vmatprep.mubr.bf16.mxu0 %v403
    %947 = vmatmul.mubr.bf16.gmra.mxu0 %v402
    %v948 = vpop.f32.mrf.mxu0
    %v949 = vadd.f32 0.0, %v948
    %v950 = vpop.f32.mrf.mxu0
    %v951 = vadd.f32 0.0, %v950
    %v952 = vpop.f32.mrf.mxu0
    %v953 = vadd.f32 0.0, %v952
    %v954 = vpop.f32.mrf.mxu0
    %v955 = vadd.f32 0.0, %v954
    %956 = vmatprep.mubr.bf16.mxu0 %v405
    %957 = vmatmul.mubr.bf16.gmra.mxu0 %v404
    %v958 = vpop.f32.mrf.mxu0
    %v959 = vadd.f32 0.0, %v958
    %v960 = vpop.f32.mrf.mxu0
    %v961 = vadd.f32 0.0, %v960
    %v962 = vpop.f32.mrf.mxu0
    %v963 = vadd.f32 0.0, %v962
    %v964 = vpop.f32.mrf.mxu0
    %v965 = vadd.f32 0.0, %v964
    %966 = vmatprep.mubr.bf16.mxu0 %v407
    %967 = vmatmul.mubr.bf16.gmra.mxu0 %v406
    %v968 = vpop.f32.mrf.mxu0
    %v969 = vadd.f32 0.0, %v968
    %v970 = vpop.f32.mrf.mxu0
    %v971 = vadd.f32 0.0, %v970
    %v972 = vpop.f32.mrf.mxu0
    %v973 = vadd.f32 0.0, %v972
    %v974 = vpop.f32.mrf.mxu0
    %v975 = vadd.f32 0.0, %v974
    %976 = vmatprep.mubr.bf16.mxu0 %v409
    %977 = vmatmul.mubr.bf16.gmra.mxu0 %v408
    %v978 = vpop.f32.mrf.mxu0
    %v979 = vadd.f32 0.0, %v978
    %v980 = vpop.f32.mrf.mxu0
    %v981 = vadd.f32 0.0, %v980
    %v982 = vpop.f32.mrf.mxu0
    %v983 = vadd.f32 0.0, %v982
    %v984 = vpop.f32.mrf.mxu0
    %v985 = vadd.f32 0.0, %v984
    %986 = vdwg.mxu0
    %987 = vmatprep.subr.bf16.mxu0 %v697
    %988 = vmatpush1.bf16.msra.mxu0 %v696
    %989 = vmatprep.subr.bf16.mxu0 %v693
    %990 = vmatpush1.bf16.msra.mxu0 %v692
    %991 = vmatprep.subr.bf16.mxu0 %v689
    %992 = vmatpush1.bf16.msra.mxu0 %v688
    %993 = vmatprep.subr.bf16.mxu0 %v685
    %994 = vmatpush1.bf16.msra.mxu0 %v684
    %995 = vmatprep.subr.bf16.mxu0 %v681
    %996 = vmatpush1.bf16.msra.mxu0 %v680
    %997 = vmatprep.subr.bf16.mxu0 %v677
    %998 = vmatpush1.bf16.msra.mxu0 %v676
    %999 = vmatprep.subr.bf16.mxu0 %v673
    %1000 = vmatpush1.bf16.msra.mxu0 %v672
    %1001 = vmatprep.subr.bf16.mxu0 %v669
    %1002 = vmatpush1.bf16.msra.mxu0 %v668
    %1003 = vmatprep.subr.bf16.mxu0 %v729
    %1004 = vmatpush2.bf16.msra.mxu0 %v728
    %1005 = vmatprep.subr.bf16.mxu0 %v725
    %1006 = vmatpush2.bf16.msra.mxu0 %v724
    %1007 = vmatprep.subr.bf16.mxu0 %v721
    %1008 = vmatpush2.bf16.msra.mxu0 %v720
    %1009 = vmatprep.subr.bf16.mxu0 %v717
    %1010 = vmatpush2.bf16.msra.mxu0 %v716
    %1011 = vmatprep.subr.bf16.mxu0 %v713
    %1012 = vmatpush2.bf16.msra.mxu0 %v712
    %1013 = vmatprep.subr.bf16.mxu0 %v709
    %1014 = vmatpush2.bf16.msra.mxu0 %v708
    %1015 = vmatprep.subr.bf16.mxu0 %v705
    %1016 = vmatpush2.bf16.msra.mxu0 %v704
    %1017 = vmatprep.subr.bf16.mxu0 %v701
    %1018 = vmatpush2.bf16.msra.mxu0 %v700
    %1019 = vmatprep.mubr.bf16.mxu0 %v379
    %1020 = vmatmul.mubr.bf16.gmra.mxu0 %v378
    %v1021 = vpop.f32.mrf.mxu0
    %v1022 = vadd.f32 0.0, %v1021
    %v1023 = vpop.f32.mrf.mxu0
    %v1024 = vadd.f32 0.0, %v1023
    %v1025 = vpop.f32.mrf.mxu0
    %v1026 = vadd.f32 0.0, %v1025
    %v1027 = vpop.f32.mrf.mxu0
    %v1028 = vadd.f32 0.0, %v1027
    %1029 = vmatprep.mubr.bf16.mxu0 %v381
    %1030 = vmatmul.mubr.bf16.gmra.mxu0 %v380
    %v1031 = vpop.f32.mrf.mxu0
    %v1032 = vadd.f32 0.0, %v1031
    %v1033 = vpop.f32.mrf.mxu0
    %v1034 = vadd.f32 0.0, %v1033
    %v1035 = vpop.f32.mrf.mxu0
    %v1036 = vadd.f32 0.0, %v1035
    %v1037 = vpop.f32.mrf.mxu0
    %v1038 = vadd.f32 0.0, %v1037
    %1039 = vmatprep.mubr.bf16.mxu0 %v383
    %1040 = vmatmul.mubr.bf16.gmra.mxu0 %v382
    %v1041 = vpop.f32.mrf.mxu0
    %v1042 = vadd.f32 0.0, %v1041
    %v1043 = vpop.f32.mrf.mxu0
    %v1044 = vadd.f32 0.0, %v1043
    %v1045 = vpop.f32.mrf.mxu0
    %v1046 = vadd.f32 0.0, %v1045
    %v1047 = vpop.f32.mrf.mxu0
    %v1048 = vadd.f32 0.0, %v1047
    %1049 = vmatprep.mubr.bf16.mxu0 %v385
    %1050 = vmatmul.mubr.bf16.gmra.mxu0 %v384
    %v1051 = vpop.f32.mrf.mxu0
    %v1052 = vadd.f32 0.0, %v1051
    %v1053 = vpop.f32.mrf.mxu0
    %v1054 = vadd.f32 0.0, %v1053
    %v1055 = vpop.f32.mrf.mxu0
    %v1056 = vadd.f32 0.0, %v1055
    %v1057 = vpop.f32.mrf.mxu0
    %v1058 = vadd.f32 0.0, %v1057
    %1059 = vmatprep.mubr.bf16.mxu0 %v387
    %1060 = vmatmul.mubr.bf16.gmra.mxu0 %v386
    %v1061 = vpop.f32.mrf.mxu0
    %v1062 = vadd.f32 0.0, %v1061
    %v1063 = vpop.f32.mrf.mxu0
    %v1064 = vadd.f32 0.0, %v1063
    %v1065 = vpop.f32.mrf.mxu0
    %v1066 = vadd.f32 0.0, %v1065
    %v1067 = vpop.f32.mrf.mxu0
    %v1068 = vadd.f32 0.0, %v1067
    %1069 = vmatprep.mubr.bf16.mxu0 %v389
    %1070 = vmatmul.mubr.bf16.gmra.mxu0 %v388
    %v1071 = vpop.f32.mrf.mxu0
    %v1072 = vadd.f32 0.0, %v1071
    %v1073 = vpop.f32.mrf.mxu0
    %v1074 = vadd.f32 0.0, %v1073
    %v1075 = vpop.f32.mrf.mxu0
    %v1076 = vadd.f32 0.0, %v1075
    %v1077 = vpop.f32.mrf.mxu0
    %v1078 = vadd.f32 0.0, %v1077
    %1079 = vmatprep.mubr.bf16.mxu0 %v391
    %1080 = vmatmul.mubr.bf16.gmra.mxu0 %v390
    %v1081 = vpop.f32.mrf.mxu0
    %v1082 = vadd.f32 0.0, %v1081
    %v1083 = vpop.f32.mrf.mxu0
    %v1084 = vadd.f32 0.0, %v1083
    %v1085 = vpop.f32.mrf.mxu0
    %v1086 = vadd.f32 0.0, %v1085
    %v1087 = vpop.f32.mrf.mxu0
    %v1088 = vadd.f32 0.0, %v1087
    %1089 = vmatprep.mubr.bf16.mxu0 %v393
    %1090 = vmatmul.mubr.bf16.gmra.mxu0 %v392
    %v1091 = vpop.f32.mrf.mxu0
    %v1092 = vadd.f32 0.0, %v1091
    %v1093 = vpop.f32.mrf.mxu0
    %v1094 = vadd.f32 0.0, %v1093
    %v1095 = vpop.f32.mrf.mxu0
    %v1096 = vadd.f32 0.0, %v1095
    %v1097 = vpop.f32.mrf.mxu0
    %v1098 = vadd.f32 0.0, %v1097
    %1099 = vmatprep.mubr.bf16.mxu0 %v395
    %1100 = vmatmul.mubr.bf16.gmra.mxu0 %v394
    %v1101 = vpop.f32.mrf.mxu0
    %v1102 = vadd.f32 0.0, %v1101
    %v1103 = vpop.f32.mrf.mxu0
    %v1104 = vadd.f32 0.0, %v1103
    %v1105 = vpop.f32.mrf.mxu0
    %v1106 = vadd.f32 0.0, %v1105
    %v1107 = vpop.f32.mrf.mxu0
    %v1108 = vadd.f32 0.0, %v1107
    %1109 = vmatprep.mubr.bf16.mxu0 %v397
    %1110 = vmatmul.mubr.bf16.gmra.mxu0 %v396
    %v1111 = vpop.f32.mrf.mxu0
    %v1112 = vadd.f32 0.0, %v1111
    %v1113 = vpop.f32.mrf.mxu0
    %v1114 = vadd.f32 0.0, %v1113
    %v1115 = vpop.f32.mrf.mxu0
    %v1116 = vadd.f32 0.0, %v1115
    %v1117 = vpop.f32.mrf.mxu0
    %v1118 = vadd.f32 0.0, %v1117
    %1119 = vmatprep.mubr.bf16.mxu0 %v399
    %1120 = vmatmul.mubr.bf16.gmra.mxu0 %v398
    %v1121 = vpop.f32.mrf.mxu0
    %v1122 = vadd.f32 0.0, %v1121
    %v1123 = vpop.f32.mrf.mxu0
    %v1124 = vadd.f32 0.0, %v1123
    %v1125 = vpop.f32.mrf.mxu0
    %v1126 = vadd.f32 0.0, %v1125
    %v1127 = vpop.f32.mrf.mxu0
    %v1128 = vadd.f32 0.0, %v1127
    %1129 = vmatprep.mubr.bf16.mxu0 %v401
    %1130 = vmatmul.mubr.bf16.gmra.mxu0 %v400
    %v1131 = vpop.f32.mrf.mxu0
    %v1132 = vadd.f32 0.0, %v1131
    %v1133 = vpop.f32.mrf.mxu0
    %v1134 = vadd.f32 0.0, %v1133
    %v1135 = vpop.f32.mrf.mxu0
    %v1136 = vadd.f32 0.0, %v1135
    %v1137 = vpop.f32.mrf.mxu0
    %v1138 = vadd.f32 0.0, %v1137
    %1139 = vmatprep.mubr.bf16.mxu0 %v403
    %1140 = vmatmul.mubr.bf16.gmra.mxu0 %v402
    %v1141 = vpop.f32.mrf.mxu0
    %v1142 = vadd.f32 0.0, %v1141
    %v1143 = vpop.f32.mrf.mxu0
    %v1144 = vadd.f32 0.0, %v1143
    %v1145 = vpop.f32.mrf.mxu0
    %v1146 = vadd.f32 0.0, %v1145
    %v1147 = vpop.f32.mrf.mxu0
    %v1148 = vadd.f32 0.0, %v1147
    %1149 = vmatprep.mubr.bf16.mxu0 %v405
    %1150 = vmatmul.mubr.bf16.gmra.mxu0 %v404
    %v1151 = vpop.f32.mrf.mxu0
    %v1152 = vadd.f32 0.0, %v1151
    %v1153 = vpop.f32.mrf.mxu0
    %v1154 = vadd.f32 0.0, %v1153
    %v1155 = vpop.f32.mrf.mxu0
    %v1156 = vadd.f32 0.0, %v1155
    %v1157 = vpop.f32.mrf.mxu0
    %v1158 = vadd.f32 0.0, %v1157
    %1159 = vmatprep.mubr.bf16.mxu0 %v407
    %1160 = vmatmul.mubr.bf16.gmra.mxu0 %v406
    %v1161 = vpop.f32.mrf.mxu0
    %v1162 = vadd.f32 0.0, %v1161
    %v1163 = vpop.f32.mrf.mxu0
    %v1164 = vadd.f32 0.0, %v1163
    %v1165 = vpop.f32.mrf.mxu0
    %v1166 = vadd.f32 0.0, %v1165
    %v1167 = vpop.f32.mrf.mxu0
    %v1168 = vadd.f32 0.0, %v1167
    %1169 = vmatprep.mubr.bf16.mxu0 %v409
    %1170 = vmatmul.mubr.bf16.gmra.mxu0 %v408
    %v1171 = vpop.f32.mrf.mxu0
    %v1172 = vadd.f32 0.0, %v1171
    %v1173 = vpop.f32.mrf.mxu0
    %v1174 = vadd.f32 0.0, %v1173
    %v1175 = vpop.f32.mrf.mxu0
    %v1176 = vadd.f32 0.0, %v1175
    %v1177 = vpop.f32.mrf.mxu0
    %v1178 = vadd.f32 0.0, %v1177
    %1179 = vdwg.mxu0
    %v1180 = vadd.f32 %v186, %v829
    %v1181 = vadd.f32 %v187, %v831
    %v1182 = vadd.f32 %v188, %v1022
    %v1183 = vadd.f32 %v189, %v1024
    %v1184 = vadd.f32 %v190, %v833
    %v1185 = vadd.f32 %v191, %v835
    %v1186 = vadd.f32 %v192, %v1026
    %v1187 = vadd.f32 %v193, %v1028
    %v1188 = vadd.f32 %v194, %v839
    %v1189 = vadd.f32 %v195, %v841
    %v1190 = vadd.f32 %v196, %v1032
    %v1191 = vadd.f32 %v197, %v1034
    %v1192 = vadd.f32 %v198, %v843
    %v1193 = vadd.f32 %v199, %v845
    %v1194 = vadd.f32 %v200, %v1036
    %v1195 = vadd.f32 %v201, %v1038
    %v1196 = vadd.f32 %v202, %v849
    %v1197 = vadd.f32 %v203, %v851
    %v1198 = vadd.f32 %v204, %v1042
    %v1199 = vadd.f32 %v205, %v1044
    %v1200 = vadd.f32 %v206, %v853
    %v1201 = vadd.f32 %v207, %v855
    %v1202 = vadd.f32 %v208, %v1046
    %v1203 = vadd.f32 %v209, %v1048
    %v1204 = vadd.f32 %v210, %v859
    %v1205 = vadd.f32 %v211, %v861
    %v1206 = vadd.f32 %v212, %v1052
    %v1207 = vadd.f32 %v213, %v1054
    %v1208 = vadd.f32 %v214, %v863
    %v1209 = vadd.f32 %v215, %v865
    %v1210 = vadd.f32 %v216, %v1056
    %v1211 = vadd.f32 %v217, %v1058
    %v1212 = vadd.f32 %v218, %v869
    %v1213 = vadd.f32 %v219, %v871
    %v1214 = vadd.f32 %v220, %v1062
    %v1215 = vadd.f32 %v221, %v1064
    %v1216 = vadd.f32 %v222, %v873
    %v1217 = vadd.f32 %v223, %v875
    %v1218 = vadd.f32 %v224, %v1066
    %v1219 = vadd.f32 %v225, %v1068
    %v1220 = vadd.f32 %v226, %v879
    %v1221 = vadd.f32 %v227, %v881
    %v1222 = vadd.f32 %v228, %v1072
    %v1223 = vadd.f32 %v229, %v1074
    %v1224 = vadd.f32 %v230, %v883
    %v1225 = vadd.f32 %v231, %v885
    %v1226 = vadd.f32 %v232, %v1076
    %v1227 = vadd.f32 %v233, %v1078
    %v1228 = vadd.f32 %v234, %v889
    %v1229 = vadd.f32 %v235, %v891
    %v1230 = vadd.f32 %v236, %v1082
    %v1231 = vadd.f32 %v237, %v1084
    %v1232 = vadd.f32 %v238, %v893
    %v1233 = vadd.f32 %v239, %v895
    %v1234 = vadd.f32 %v240, %v1086
    %v1235 = vadd.f32 %v241, %v1088
    %v1236 = vadd.f32 %v242, %v899
    %v1237 = vadd.f32 %v243, %v901
    %v1238 = vadd.f32 %v244, %v1092
    %v1239 = vadd.f32 %v245, %v1094
    %v1240 = vadd.f32 %v246, %v903
    %v1241 = vadd.f32 %v247, %v905
    %v1242 = vadd.f32 %v248, %v1096
    %v1243 = vadd.f32 %v249, %v1098
    %v1244 = vadd.f32 %v250, %v909
    %v1245 = vadd.f32 %v251, %v911
    %v1246 = vadd.f32 %v252, %v1102
    %v1247 = vadd.f32 %v253, %v1104
    %v1248 = vadd.f32 %v254, %v913
    %v1249 = vadd.f32 %v255, %v915
    %v1250 = vadd.f32 %v256, %v1106
    %v1251 = vadd.f32 %v257, %v1108
    %v1252 = vadd.f32 %v258, %v919
    %v1253 = vadd.f32 %v259, %v921
    %v1254 = vadd.f32 %v260, %v1112
    %v1255 = vadd.f32 %v261, %v1114
    %v1256 = vadd.f32 %v262, %v923
    %v1257 = vadd.f32 %v263, %v925
    %v1258 = vadd.f32 %v264, %v1116
    %v1259 = vadd.f32 %v265, %v1118
    %v1260 = vadd.f32 %v266, %v929
    %v1261 = vadd.f32 %v267, %v931
    %v1262 = vadd.f32 %v268, %v1122
    %v1263 = vadd.f32 %v269, %v1124
    %v1264 = vadd.f32 %v270, %v933
    %v1265 = vadd.f32 %v271, %v935
    %v1266 = vadd.f32 %v272, %v1126
    %v1267 = vadd.f32 %v273, %v1128
    %v1268 = vadd.f32 %v274, %v939
    %v1269 = vadd.f32 %v275, %v941
    %v1270 = vadd.f32 %v276, %v1132
    %v1271 = vadd.f32 %v277, %v1134
    %v1272 = vadd.f32 %v278, %v943
    %v1273 = vadd.f32 %v279, %v945
    %v1274 = vadd.f32 %v280, %v1136
    %v1275 = vadd.f32 %v281, %v1138
    %v1276 = vadd.f32 %v282, %v949
    %v1277 = vadd.f32 %v283, %v951
    %v1278 = vadd.f32 %v284, %v1142
    %v1279 = vadd.f32 %v285, %v1144
    %v1280 = vadd.f32 %v286, %v953
    %v1281 = vadd.f32 %v287, %v955
    %v1282 = vadd.f32 %v288, %v1146
    %v1283 = vadd.f32 %v289, %v1148
    %v1284 = vadd.f32 %v290, %v959
    %v1285 = vadd.f32 %v291, %v961
    %v1286 = vadd.f32 %v292, %v1152
    %v1287 = vadd.f32 %v293, %v1154
    %v1288 = vadd.f32 %v294, %v963
    %v1289 = vadd.f32 %v295, %v965
    %v1290 = vadd.f32 %v296, %v1156
    %v1291 = vadd.f32 %v297, %v1158
    %v1292 = vadd.f32 %v298, %v969
    %v1293 = vadd.f32 %v299, %v971
    %v1294 = vadd.f32 %v300, %v1162
    %v1295 = vadd.f32 %v301, %v1164
    %v1296 = vadd.f32 %v302, %v973
    %v1297 = vadd.f32 %v303, %v975
    %v1298 = vadd.f32 %v304, %v1166
    %v1299 = vadd.f32 %v305, %v1168
    %v1300 = vadd.f32 %v306, %v979
    %v1301 = vadd.f32 %v307, %v981
    %v1302 = vadd.f32 %v308, %v1172
    %v1303 = vadd.f32 %v309, %v1174
    %v1304 = vadd.f32 %v310, %v983
    %v1305 = vadd.f32 %v311, %v985
    %v1306 = vadd.f32 %v312, %v1176
    %v1307 = vadd.f32 %v313, %v1178
    %1308 = vst [vmem:[#allocation2] sm:$0xff] %v1180
    %1309 = vst [vmem:[#allocation2 + $0x8] sm:$0xff] %v1181
    %1310 = vst [vmem:[#allocation2 + $0x10] sm:$0xff] %v1182
    %1311 = vst [vmem:[#allocation2 + $0x18] sm:$0xff] %v1183
    %1312 = vst [vmem:[#allocation2 + $0x20] sm:$0xff] %v1184
    %1313 = vst [vmem:[#allocation2 + $0x28] sm:$0xff] %v1185
    %1314 = vst [vmem:[#allocation2 + $0x30] sm:$0xff] %v1186
    %1315 = vst [vmem:[#allocation2 + $0x38] sm:$0xff] %v1187
    %1316 = vst [vmem:[#allocation2 + $0x40] sm:$0xff] %v1188
    %1317 = vst [vmem:[#allocation2 + $0x48] sm:$0xff] %v1189
    %1318 = vst [vmem:[#allocation2 + $0x50] sm:$0xff] %v1190
    %1319 = vst [vmem:[#allocation2 + $0x58] sm:$0xff] %v1191
    %1320 = vst [vmem:[#allocation2 + $0x60] sm:$0xff] %v1192
    %1321 = vst [vmem:[#allocation2 + $0x68] sm:$0xff] %v1193
    %1322 = vst [vmem:[#allocation2 + $0x70] sm:$0xff] %v1194
    %1323 = vst [vmem:[#allocation2 + $0x78] sm:$0xff] %v1195
    %1324 = vst [vmem:[#allocation2 + $0x80] sm:$0xff] %v1196
    %1325 = vst [vmem:[#allocation2 + $0x88] sm:$0xff] %v1197
    %1326 = vst [vmem:[#allocation2 + $0x90] sm:$0xff] %v1198
    %1327 = vst [vmem:[#allocation2 + $0x98] sm:$0xff] %v1199
    %1328 = vst [vmem:[#allocation2 + $0xa0] sm:$0xff] %v1200
    %1329 = vst [vmem:[#allocation2 + $0xa8] sm:$0xff] %v1201
    %1330 = vst [vmem:[#allocation2 + $0xb0] sm:$0xff] %v1202
    %1331 = vst [vmem:[#allocation2 + $0xb8] sm:$0xff] %v1203
    %1332 = vst [vmem:[#allocation2 + $0xc0] sm:$0xff] %v1204
    %1333 = vst [vmem:[#allocation2 + $0xc8] sm:$0xff] %v1205
    %1334 = vst [vmem:[#allocation2 + $0xd0] sm:$0xff] %v1206
    %1335 = vst [vmem:[#allocation2 + $0xd8] sm:$0xff] %v1207
    %1336 = vst [vmem:[#allocation2 + $0xe0] sm:$0xff] %v1208
    %1337 = vst [vmem:[#allocation2 + $0xe8] sm:$0xff] %v1209
    %1338 = vst [vmem:[#allocation2 + $0xf0] sm:$0xff] %v1210
    %1339 = vst [vmem:[#allocation2 + $0xf8] sm:$0xff] %v1211
    %1340 = vst [vmem:[#allocation2 + $0x100] sm:$0xff] %v1212
    %1341 = vst [vmem:[#allocation2 + $0x108] sm:$0xff] %v1213
    %1342 = vst [vmem:[#allocation2 + $0x110] sm:$0xff] %v1214
    %1343 = vst [vmem:[#allocation2 + $0x118] sm:$0xff] %v1215
    %1344 = vst [vmem:[#allocation2 + $0x120] sm:$0xff] %v1216
    %1345 = vst [vmem:[#allocation2 + $0x128] sm:$0xff] %v1217
    %1346 = vst [vmem:[#allocation2 + $0x130] sm:$0xff] %v1218
    %1347 = vst [vmem:[#allocation2 + $0x138] sm:$0xff] %v1219
    %1348 = vst [vmem:[#allocation2 + $0x140] sm:$0xff] %v1220
    %1349 = vst [vmem:[#allocation2 + $0x148] sm:$0xff] %v1221
    %1350 = vst [vmem:[#allocation2 + $0x150] sm:$0xff] %v1222
    %1351 = vst [vmem:[#allocation2 + $0x158] sm:$0xff] %v1223
    %1352 = vst [vmem:[#allocation2 + $0x160] sm:$0xff] %v1224
    %1353 = vst [vmem:[#allocation2 + $0x168] sm:$0xff] %v1225
    %1354 = vst [vmem:[#allocation2 + $0x170] sm:$0xff] %v1226
    %1355 = vst [vmem:[#allocation2 + $0x178] sm:$0xff] %v1227
    %1356 = vst [vmem:[#allocation2 + $0x180] sm:$0xff] %v1228
    %1357 = vst [vmem:[#allocation2 + $0x188] sm:$0xff] %v1229
    %1358 = vst [vmem:[#allocation2 + $0x190] sm:$0xff] %v1230
    %1359 = vst [vmem:[#allocation2 + $0x198] sm:$0xff] %v1231
    %1360 = vst [vmem:[#allocation2 + $0x1a0] sm:$0xff] %v1232
    %1361 = vst [vmem:[#allocation2 + $0x1a8] sm:$0xff] %v1233
    %1362 = vst [vmem:[#allocation2 + $0x1b0] sm:$0xff] %v1234
    %1363 = vst [vmem:[#allocation2 + $0x1b8] sm:$0xff] %v1235
    %1364 = vst [vmem:[#allocation2 + $0x1c0] sm:$0xff] %v1236
    %1365 = vst [vmem:[#allocation2 + $0x1c8] sm:$0xff] %v1237
    %1366 = vst [vmem:[#allocation2 + $0x1d0] sm:$0xff] %v1238
    %1367 = vst [vmem:[#allocation2 + $0x1d8] sm:$0xff] %v1239
    %1368 = vst [vmem:[#allocation2 + $0x1e0] sm:$0xff] %v1240
    %1369 = vst [vmem:[#allocation2 + $0x1e8] sm:$0xff] %v1241
    %1370 = vst [vmem:[#allocation2 + $0x1f0] sm:$0xff] %v1242
    %1371 = vst [vmem:[#allocation2 + $0x1f8] sm:$0xff] %v1243
    %1372 = vst [vmem:[#allocation2 + $0x200] sm:$0xff] %v1244
    %1373 = vst [vmem:[#allocation2 + $0x208] sm:$0xff] %v1245
    %1374 = vst [vmem:[#allocation2 + $0x210] sm:$0xff] %v1246
    %1375 = vst [vmem:[#allocation2 + $0x218] sm:$0xff] %v1247
    %1376 = vst [vmem:[#allocation2 + $0x220] sm:$0xff] %v1248
    %1377 = vst [vmem:[#allocation2 + $0x228] sm:$0xff] %v1249
    %1378 = vst [vmem:[#allocation2 + $0x230] sm:$0xff] %v1250
    %1379 = vst [vmem:[#allocation2 + $0x238] sm:$0xff] %v1251
    %1380 = vst [vmem:[#allocation2 + $0x240] sm:$0xff] %v1252
    %1381 = vst [vmem:[#allocation2 + $0x248] sm:$0xff] %v1253
    %1382 = vst [vmem:[#allocation2 + $0x250] sm:$0xff] %v1254
    %1383 = vst [vmem:[#allocation2 + $0x258] sm:$0xff] %v1255
    %1384 = vst [vmem:[#allocation2 + $0x260] sm:$0xff] %v1256
    %1385 = vst [vmem:[#allocation2 + $0x268] sm:$0xff] %v1257
    %1386 = vst [vmem:[#allocation2 + $0x270] sm:$0xff] %v1258
    %1387 = vst [vmem:[#allocation2 + $0x278] sm:$0xff] %v1259
    %1388 = vst [vmem:[#allocation2 + $0x280] sm:$0xff] %v1260
    %1389 = vst [vmem:[#allocation2 + $0x288] sm:$0xff] %v1261
    %1390 = vst [vmem:[#allocation2 + $0x290] sm:$0xff] %v1262
    %1391 = vst [vmem:[#allocation2 + $0x298] sm:$0xff] %v1263
    %1392 = vst [vmem:[#allocation2 + $0x2a0] sm:$0xff] %v1264
    %1393 = vst [vmem:[#allocation2 + $0x2a8] sm:$0xff] %v1265
    %1394 = vst [vmem:[#allocation2 + $0x2b0] sm:$0xff] %v1266
    %1395 = vst [vmem:[#allocation2 + $0x2b8] sm:$0xff] %v1267
    %1396 = vst [vmem:[#allocation2 + $0x2c0] sm:$0xff] %v1268
    %1397 = vst [vmem:[#allocation2 + $0x2c8] sm:$0xff] %v1269
    %1398 = vst [vmem:[#allocation2 + $0x2d0] sm:$0xff] %v1270
    %1399 = vst [vmem:[#allocation2 + $0x2d8] sm:$0xff] %v1271
    %1400 = vst [vmem:[#allocation2 + $0x2e0] sm:$0xff] %v1272
    %1401 = vst [vmem:[#allocation2 + $0x2e8] sm:$0xff] %v1273
    %1402 = vst [vmem:[#allocation2 + $0x2f0] sm:$0xff] %v1274
    %1403 = vst [vmem:[#allocation2 + $0x2f8] sm:$0xff] %v1275
    %1404 = vst [vmem:[#allocation2 + $0x300] sm:$0xff] %v1276
    %1405 = vst [vmem:[#allocation2 + $0x308] sm:$0xff] %v1277
    %1406 = vst [vmem:[#allocation2 + $0x310] sm:$0xff] %v1278
    %1407 = vst [vmem:[#allocation2 + $0x318] sm:$0xff] %v1279
    %1408 = vst [vmem:[#allocation2 + $0x320] sm:$0xff] %v1280
    %1409 = vst [vmem:[#allocation2 + $0x328] sm:$0xff] %v1281
    %1410 = vst [vmem:[#allocation2 + $0x330] sm:$0xff] %v1282
    %1411 = vst [vmem:[#allocation2 + $0x338] sm:$0xff] %v1283
    %1412 = vst [vmem:[#allocation2 + $0x340] sm:$0xff] %v1284
    %1413 = vst [vmem:[#allocation2 + $0x348] sm:$0xff] %v1285
    %1414 = vst [vmem:[#allocation2 + $0x350] sm:$0xff] %v1286
    %1415 = vst [vmem:[#allocation2 + $0x358] sm:$0xff] %v1287
    %1416 = vst [vmem:[#allocation2 + $0x360] sm:$0xff] %v1288
    %1417 = vst [vmem:[#allocation2 + $0x368] sm:$0xff] %v1289
    %1418 = vst [vmem:[#allocation2 + $0x370] sm:$0xff] %v1290
    %1419 = vst [vmem:[#allocation2 + $0x378] sm:$0xff] %v1291
    %1420 = vst [vmem:[#allocation2 + $0x380] sm:$0xff] %v1292
    %1421 = vst [vmem:[#allocation2 + $0x388] sm:$0xff] %v1293
    %1422 = vst [vmem:[#allocation2 + $0x390] sm:$0xff] %v1294
    %1423 = vst [vmem:[#allocation2 + $0x398] sm:$0xff] %v1295
    %1424 = vst [vmem:[#allocation2 + $0x3a0] sm:$0xff] %v1296
    %1425 = vst [vmem:[#allocation2 + $0x3a8] sm:$0xff] %v1297
    %1426 = vst [vmem:[#allocation2 + $0x3b0] sm:$0xff] %v1298
    %1427 = vst [vmem:[#allocation2 + $0x3b8] sm:$0xff] %v1299
    %1428 = vst [vmem:[#allocation2 + $0x3c0] sm:$0xff] %v1300
    %1429 = vst [vmem:[#allocation2 + $0x3c8] sm:$0xff] %v1301
    %1430 = vst [vmem:[#allocation2 + $0x3d0] sm:$0xff] %v1302
    %1431 = vst [vmem:[#allocation2 + $0x3d8] sm:$0xff] %v1303
    %1432 = vst [vmem:[#allocation2 + $0x3e0] sm:$0xff] %v1304
    %1433 = vst [vmem:[#allocation2 + $0x3e8] sm:$0xff] %v1305
    %1434 = vst [vmem:[#allocation2 + $0x3f0] sm:$0xff] %v1306
    %1435 = vst [vmem:[#allocation2 + $0x3f8] sm:$0xff] %v1307
    // Predicated region
    $region30: #{tpu_custom_call.1} parent=1 // pred_check
      %p1436 = pneg %p54
    $region31: #{tpu_custom_call.1} parent=1 // pred_check_branch
      %1438 = sbr.rel (%p1436) target = $region33
    $region32: #{tpu_custom_call.1} parent=1 // pred_region
      %v1439 = vld [vmem:[#allocation2] sm:$0xff]
      %v1440 = vld [vmem:[#allocation2 + $0x8] sm:$0xff]
      %v1441 = vld [vmem:[#allocation2 + $0x10] sm:$0xff]
      %v1442 = vld [vmem:[#allocation2 + $0x18] sm:$0xff]
      %v1443 = vld [vmem:[#allocation2 + $0x20] sm:$0xff]
      %v1444 = vld [vmem:[#allocation2 + $0x28] sm:$0xff]
      %v1445 = vld [vmem:[#allocation2 + $0x30] sm:$0xff]
      %v1446 = vld [vmem:[#allocation2 + $0x38] sm:$0xff]
      %v1447 = vld [vmem:[#allocation2 + $0x40] sm:$0xff]
      %v1448 = vld [vmem:[#allocation2 + $0x48] sm:$0xff]
      %v1449 = vld [vmem:[#allocation2 + $0x50] sm:$0xff]
      %v1450 = vld [vmem:[#allocation2 + $0x58] sm:$0xff]
      %v1451 = vld [vmem:[#allocation2 + $0x60] sm:$0xff]
      %v1452 = vld [vmem:[#allocation2 + $0x68] sm:$0xff]
      %v1453 = vld [vmem:[#allocation2 + $0x70] sm:$0xff]
      %v1454 = vld [vmem:[#allocation2 + $0x78] sm:$0xff]
      %v1455 = vld [vmem:[#allocation2 + $0x80] sm:$0xff]
      %v1456 = vld [vmem:[#allocation2 + $0x88] sm:$0xff]
      %v1457 = vld [vmem:[#allocation2 + $0x90] sm:$0xff]
      %v1458 = vld [vmem:[#allocation2 + $0x98] sm:$0xff]
      %v1459 = vld [vmem:[#allocation2 + $0xa0] sm:$0xff]
      %v1460 = vld [vmem:[#allocation2 + $0xa8] sm:$0xff]
      %v1461 = vld [vmem:[#allocation2 + $0xb0] sm:$0xff]
      %v1462 = vld [vmem:[#allocation2 + $0xb8] sm:$0xff]
      %v1463 = vld [vmem:[#allocation2 + $0xc0] sm:$0xff]
      %v1464 = vld [vmem:[#allocation2 + $0xc8] sm:$0xff]
      %v1465 = vld [vmem:[#allocation2 + $0xd0] sm:$0xff]
      %v1466 = vld [vmem:[#allocation2 + $0xd8] sm:$0xff]
      %v1467 = vld [vmem:[#allocation2 + $0xe0] sm:$0xff]
      %v1468 = vld [vmem:[#allocation2 + $0xe8] sm:$0xff]
      %v1469 = vld [vmem:[#allocation2 + $0xf0] sm:$0xff]
      %v1470 = vld [vmem:[#allocation2 + $0xf8] sm:$0xff]
      %v1471 = vld [vmem:[#allocation2 + $0x100] sm:$0xff]
      %v1472 = vld [vmem:[#allocation2 + $0x108] sm:$0xff]
      %v1473 = vld [vmem:[#allocation2 + $0x110] sm:$0xff]
      %v1474 = vld [vmem:[#allocation2 + $0x118] sm:$0xff]
      %v1475 = vld [vmem:[#allocation2 + $0x120] sm:$0xff]
      %v1476 = vld [vmem:[#allocation2 + $0x128] sm:$0xff]
      %v1477 = vld [vmem:[#allocation2 + $0x130] sm:$0xff]
      %v1478 = vld [vmem:[#allocation2 + $0x138] sm:$0xff]
      %v1479 = vld [vmem:[#allocation2 + $0x140] sm:$0xff]
      %v1480 = vld [vmem:[#allocation2 + $0x148] sm:$0xff]
      %v1481 = vld [vmem:[#allocation2 + $0x150] sm:$0xff]
      %v1482 = vld [vmem:[#allocation2 + $0x158] sm:$0xff]
      %v1483 = vld [vmem:[#allocation2 + $0x160] sm:$0xff]
      %v1484 = vld [vmem:[#allocation2 + $0x168] sm:$0xff]
      %v1485 = vld [vmem:[#allocation2 + $0x170] sm:$0xff]
      %v1486 = vld [vmem:[#allocation2 + $0x178] sm:$0xff]
      %v1487 = vld [vmem:[#allocation2 + $0x180] sm:$0xff]
      %v1488 = vld [vmem:[#allocation2 + $0x188] sm:$0xff]
      %v1489 = vld [vmem:[#allocation2 + $0x190] sm:$0xff]
      %v1490 = vld [vmem:[#allocation2 + $0x198] sm:$0xff]
      %v1491 = vld [vmem:[#allocation2 + $0x1a0] sm:$0xff]
      %v1492 = vld [vmem:[#allocation2 + $0x1a8] sm:$0xff]
      %v1493 = vld [vmem:[#allocation2 + $0x1b0] sm:$0xff]
      %v1494 = vld [vmem:[#allocation2 + $0x1b8] sm:$0xff]
      %v1495 = vld [vmem:[#allocation2 + $0x1c0] sm:$0xff]
      %v1496 = vld [vmem:[#allocation2 + $0x1c8] sm:$0xff]
      %v1497 = vld [vmem:[#allocation2 + $0x1d0] sm:$0xff]
      %v1498 = vld [vmem:[#allocation2 + $0x1d8] sm:$0xff]
      %v1499 = vld [vmem:[#allocation2 + $0x1e0] sm:$0xff]
      %v1500 = vld [vmem:[#allocation2 + $0x1e8] sm:$0xff]
      %v1501 = vld [vmem:[#allocation2 + $0x1f0] sm:$0xff]
      %v1502 = vld [vmem:[#allocation2 + $0x1f8] sm:$0xff]
      %v1503 = vld [vmem:[#allocation2 + $0x200] sm:$0xff]
      %v1504 = vld [vmem:[#allocation2 + $0x208] sm:$0xff]
      %v1505 = vld [vmem:[#allocation2 + $0x210] sm:$0xff]
      %v1506 = vld [vmem:[#allocation2 + $0x218] sm:$0xff]
      %v1507 = vld [vmem:[#allocation2 + $0x220] sm:$0xff]
      %v1508 = vld [vmem:[#allocation2 + $0x228] sm:$0xff]
      %v1509 = vld [vmem:[#allocation2 + $0x230] sm:$0xff]
      %v1510 = vld [vmem:[#allocation2 + $0x238] sm:$0xff]
      %v1511 = vld [vmem:[#allocation2 + $0x240] sm:$0xff]
      %v1512 = vld [vmem:[#allocation2 + $0x248] sm:$0xff]
      %v1513 = vld [vmem:[#allocation2 + $0x250] sm:$0xff]
      %v1514 = vld [vmem:[#allocation2 + $0x258] sm:$0xff]
      %v1515 = vld [vmem:[#allocation2 + $0x260] sm:$0xff]
      %v1516 = vld [vmem:[#allocation2 + $0x268] sm:$0xff]
      %v1517 = vld [vmem:[#allocation2 + $0x270] sm:$0xff]
      %v1518 = vld [vmem:[#allocation2 + $0x278] sm:$0xff]
      %v1519 = vld [vmem:[#allocation2 + $0x280] sm:$0xff]
      %v1520 = vld [vmem:[#allocation2 + $0x288] sm:$0xff]
      %v1521 = vld [vmem:[#allocation2 + $0x290] sm:$0xff]
      %v1522 = vld [vmem:[#allocation2 + $0x298] sm:$0xff]
      %v1523 = vld [vmem:[#allocation2 + $0x2a0] sm:$0xff]
      %v1524 = vld [vmem:[#allocation2 + $0x2a8] sm:$0xff]
      %v1525 = vld [vmem:[#allocation2 + $0x2b0] sm:$0xff]
      %v1526 = vld [vmem:[#allocation2 + $0x2b8] sm:$0xff]
      %v1527 = vld [vmem:[#allocation2 + $0x2c0] sm:$0xff]
      %v1528 = vld [vmem:[#allocation2 + $0x2c8] sm:$0xff]
      %v1529 = vld [vmem:[#allocation2 + $0x2d0] sm:$0xff]
      %v1530 = vld [vmem:[#allocation2 + $0x2d8] sm:$0xff]
      %v1531 = vld [vmem:[#allocation2 + $0x2e0] sm:$0xff]
      %v1532 = vld [vmem:[#allocation2 + $0x2e8] sm:$0xff]
      %v1533 = vld [vmem:[#allocation2 + $0x2f0] sm:$0xff]
      %v1534 = vld [vmem:[#allocation2 + $0x2f8] sm:$0xff]
      %v1535 = vld [vmem:[#allocation2 + $0x300] sm:$0xff]
      %v1536 = vld [vmem:[#allocation2 + $0x308] sm:$0xff]
      %v1537 = vld [vmem:[#allocation2 + $0x310] sm:$0xff]
      %v1538 = vld [vmem:[#allocation2 + $0x318] sm:$0xff]
      %v1539 = vld [vmem:[#allocation2 + $0x320] sm:$0xff]
      %v1540 = vld [vmem:[#allocation2 + $0x328] sm:$0xff]
      %v1541 = vld [vmem:[#allocation2 + $0x330] sm:$0xff]
      %v1542 = vld [vmem:[#allocation2 + $0x338] sm:$0xff]
      %v1543 = vld [vmem:[#allocation2 + $0x340] sm:$0xff]
      %v1544 = vld [vmem:[#allocation2 + $0x348] sm:$0xff]
      %v1545 = vld [vmem:[#allocation2 + $0x350] sm:$0xff]
      %v1546 = vld [vmem:[#allocation2 + $0x358] sm:$0xff]
      %v1547 = vld [vmem:[#allocation2 + $0x360] sm:$0xff]
      %v1548 = vld [vmem:[#allocation2 + $0x368] sm:$0xff]
      %v1549 = vld [vmem:[#allocation2 + $0x370] sm:$0xff]
      %v1550 = vld [vmem:[#allocation2 + $0x378] sm:$0xff]
      %v1551 = vld [vmem:[#allocation2 + $0x380] sm:$0xff]
      %v1552 = vld [vmem:[#allocation2 + $0x388] sm:$0xff]
      %v1553 = vld [vmem:[#allocation2 + $0x390] sm:$0xff]
      %v1554 = vld [vmem:[#allocation2 + $0x398] sm:$0xff]
      %v1555 = vld [vmem:[#allocation2 + $0x3a0] sm:$0xff]
      %v1556 = vld [vmem:[#allocation2 + $0x3a8] sm:$0xff]
      %v1557 = vld [vmem:[#allocation2 + $0x3b0] sm:$0xff]
      %v1558 = vld [vmem:[#allocation2 + $0x3b8] sm:$0xff]
      %v1559 = vld [vmem:[#allocation2 + $0x3c0] sm:$0xff]
      %v1560 = vld [vmem:[#allocation2 + $0x3c8] sm:$0xff]
      %v1561 = vld [vmem:[#allocation2 + $0x3d0] sm:$0xff]
      %v1562 = vld [vmem:[#allocation2 + $0x3d8] sm:$0xff]
      %v1563 = vld [vmem:[#allocation2 + $0x3e0] sm:$0xff]
      %v1564 = vld [vmem:[#allocation2 + $0x3e8] sm:$0xff]
      %v1565 = vld [vmem:[#allocation2 + $0x3f0] sm:$0xff]
      %v1566 = vld [vmem:[#allocation2 + $0x3f8] sm:$0xff]
      %v1567 = vld [vmem:[#allocation8] sm:$0xf]
      %v1569 = vlaneseq
      %v1570 = vshrl.u32 %v1569, 7
      %v1571 = vsub.s32 0, %v1570
      %v1572 = vrot.slane %v1567, %v1571
      %v1573 = vlaneseq
      %v1574 = vshrl.u32 %v1573, 7
      %v1575 = vsub.s32 1, %v1574
      %v1576 = vrot.slane %v1567, %v1575
      %v1577 = vlaneseq
      %v1578 = vshrl.u32 %v1577, 7
      %v1579 = vsub.s32 2, %v1578
      %v1580 = vrot.slane %v1567, %v1579
      %v1581 = vlaneseq
      %v1582 = vshrl.u32 %v1581, 7
      %v1583 = vsub.s32 3, %v1582
      %v1584 = vrot.slane %v1567, %v1583
      %v1589 = vadd.f32 %v1439, %v1572
      %v1590 = vadd.f32 %v1440, %v1576
      %v1591 = vadd.f32 %v1441, %v1580
      %v1592 = vadd.f32 %v1442, %v1584
      %v1593 = vadd.f32 %v1443, %v1572
      %v1594 = vadd.f32 %v1444, %v1576
      %v1595 = vadd.f32 %v1445, %v1580
      %v1596 = vadd.f32 %v1446, %v1584
      %v1597 = vadd.f32 %v1447, %v1572
      %v1598 = vadd.f32 %v1448, %v1576
      %v1599 = vadd.f32 %v1449, %v1580
      %v1600 = vadd.f32 %v1450, %v1584
      %v1601 = vadd.f32 %v1451, %v1572
      %v1602 = vadd.f32 %v1452, %v1576
      %v1603 = vadd.f32 %v1453, %v1580
      %v1604 = vadd.f32 %v1454, %v1584
      %v1605 = vadd.f32 %v1455, %v1572
      %v1606 = vadd.f32 %v1456, %v1576
      %v1607 = vadd.f32 %v1457, %v1580
      %v1608 = vadd.f32 %v1458, %v1584
      %v1609 = vadd.f32 %v1459, %v1572
      %v1610 = vadd.f32 %v1460, %v1576
      %v1611 = vadd.f32 %v1461, %v1580
      %v1612 = vadd.f32 %v1462, %v1584
      %v1613 = vadd.f32 %v1463, %v1572
      %v1614 = vadd.f32 %v1464, %v1576
      %v1615 = vadd.f32 %v1465, %v1580
      %v1616 = vadd.f32 %v1466, %v1584
      %v1617 = vadd.f32 %v1467, %v1572
      %v1618 = vadd.f32 %v1468, %v1576
      %v1619 = vadd.f32 %v1469, %v1580
      %v1620 = vadd.f32 %v1470, %v1584
      %v1621 = vadd.f32 %v1471, %v1572
      %v1622 = vadd.f32 %v1472, %v1576
      %v1623 = vadd.f32 %v1473, %v1580
      %v1624 = vadd.f32 %v1474, %v1584
      %v1625 = vadd.f32 %v1475, %v1572
      %v1626 = vadd.f32 %v1476, %v1576
      %v1627 = vadd.f32 %v1477, %v1580
      %v1628 = vadd.f32 %v1478, %v1584
      %v1629 = vadd.f32 %v1479, %v1572
      %v1630 = vadd.f32 %v1480, %v1576
      %v1631 = vadd.f32 %v1481, %v1580
      %v1632 = vadd.f32 %v1482, %v1584
      %v1633 = vadd.f32 %v1483, %v1572
      %v1634 = vadd.f32 %v1484, %v1576
      %v1635 = vadd.f32 %v1485, %v1580
      %v1636 = vadd.f32 %v1486, %v1584
      %v1637 = vadd.f32 %v1487, %v1572
      %v1638 = vadd.f32 %v1488, %v1576
      %v1639 = vadd.f32 %v1489, %v1580
      %v1640 = vadd.f32 %v1490, %v1584
      %v1641 = vadd.f32 %v1491, %v1572
      %v1642 = vadd.f32 %v1492, %v1576
      %v1643 = vadd.f32 %v1493, %v1580
      %v1644 = vadd.f32 %v1494, %v1584
      %v1645 = vadd.f32 %v1495, %v1572
      %v1646 = vadd.f32 %v1496, %v1576
      %v1647 = vadd.f32 %v1497, %v1580
      %v1648 = vadd.f32 %v1498, %v1584
      %v1649 = vadd.f32 %v1499, %v1572
      %v1650 = vadd.f32 %v1500, %v1576
      %v1651 = vadd.f32 %v1501, %v1580
      %v1652 = vadd.f32 %v1502, %v1584
      %v1653 = vadd.f32 %v1503, %v1572
      %v1654 = vadd.f32 %v1504, %v1576
      %v1655 = vadd.f32 %v1505, %v1580
      %v1656 = vadd.f32 %v1506, %v1584
      %v1657 = vadd.f32 %v1507, %v1572
      %v1658 = vadd.f32 %v1508, %v1576
      %v1659 = vadd.f32 %v1509, %v1580
      %v1660 = vadd.f32 %v1510, %v1584
      %v1661 = vadd.f32 %v1511, %v1572
      %v1662 = vadd.f32 %v1512, %v1576
      %v1663 = vadd.f32 %v1513, %v1580
      %v1664 = vadd.f32 %v1514, %v1584
      %v1665 = vadd.f32 %v1515, %v1572
      %v1666 = vadd.f32 %v1516, %v1576
      %v1667 = vadd.f32 %v1517, %v1580
      %v1668 = vadd.f32 %v1518, %v1584
      %v1669 = vadd.f32 %v1519, %v1572
      %v1670 = vadd.f32 %v1520, %v1576
      %v1671 = vadd.f32 %v1521, %v1580
      %v1672 = vadd.f32 %v1522, %v1584
      %v1673 = vadd.f32 %v1523, %v1572
      %v1674 = vadd.f32 %v1524, %v1576
      %v1675 = vadd.f32 %v1525, %v1580
      %v1676 = vadd.f32 %v1526, %v1584
      %v1677 = vadd.f32 %v1527, %v1572
      %v1678 = vadd.f32 %v1528, %v1576
      %v1679 = vadd.f32 %v1529, %v1580
      %v1680 = vadd.f32 %v1530, %v1584
      %v1681 = vadd.f32 %v1531, %v1572
      %v1682 = vadd.f32 %v1532, %v1576
      %v1683 = vadd.f32 %v1533, %v1580
      %v1684 = vadd.f32 %v1534, %v1584
      %v1685 = vadd.f32 %v1535, %v1572
      %v1686 = vadd.f32 %v1536, %v1576
      %v1687 = vadd.f32 %v1537, %v1580
      %v1688 = vadd.f32 %v1538, %v1584
      %v1689 = vadd.f32 %v1539, %v1572
      %v1690 = vadd.f32 %v1540, %v1576
      %v1691 = vadd.f32 %v1541, %v1580
      %v1692 = vadd.f32 %v1542, %v1584
      %v1693 = vadd.f32 %v1543, %v1572
      %v1694 = vadd.f32 %v1544, %v1576
      %v1695 = vadd.f32 %v1545, %v1580
      %v1696 = vadd.f32 %v1546, %v1584
      %v1697 = vadd.f32 %v1547, %v1572
      %v1698 = vadd.f32 %v1548, %v1576
      %v1699 = vadd.f32 %v1549, %v1580
      %v1700 = vadd.f32 %v1550, %v1584
      %v1701 = vadd.f32 %v1551, %v1572
      %v1702 = vadd.f32 %v1552, %v1576
      %v1703 = vadd.f32 %v1553, %v1580
      %v1704 = vadd.f32 %v1554, %v1584
      %v1705 = vadd.f32 %v1555, %v1572
      %v1706 = vadd.f32 %v1556, %v1576
      %v1707 = vadd.f32 %v1557, %v1580
      %v1708 = vadd.f32 %v1558, %v1584
      %v1709 = vadd.f32 %v1559, %v1572
      %v1710 = vadd.f32 %v1560, %v1576
      %v1711 = vadd.f32 %v1561, %v1580
      %v1712 = vadd.f32 %v1562, %v1584
      %v1713 = vadd.f32 %v1563, %v1572
      %v1714 = vadd.f32 %v1564, %v1576
      %v1715 = vadd.f32 %v1565, %v1580
      %v1716 = vadd.f32 %v1566, %v1584
      %v1717 = vpack.c.bf16 %v1593, %v1589
      %v1718 = vpack.c.bf16 %v1594, %v1590
      %v1719 = vpack.c.bf16 %v1595, %v1591
      %v1720 = vpack.c.bf16 %v1596, %v1592
      %v1721 = vpack.c.bf16 %v1601, %v1597
      %v1722 = vpack.c.bf16 %v1602, %v1598
      %v1723 = vpack.c.bf16 %v1603, %v1599
      %v1724 = vpack.c.bf16 %v1604, %v1600
      %v1725 = vpack.c.bf16 %v1609, %v1605
      %v1726 = vpack.c.bf16 %v1610, %v1606
      %v1727 = vpack.c.bf16 %v1611, %v1607
      %v1728 = vpack.c.bf16 %v1612, %v1608
      %v1729 = vpack.c.bf16 %v1617, %v1613
      %v1730 = vpack.c.bf16 %v1618, %v1614
      %v1731 = vpack.c.bf16 %v1619, %v1615
      %v1732 = vpack.c.bf16 %v1620, %v1616
      %v1733 = vpack.c.bf16 %v1625, %v1621
      %v1734 = vpack.c.bf16 %v1626, %v1622
      %v1735 = vpack.c.bf16 %v1627, %v1623
      %v1736 = vpack.c.bf16 %v1628, %v1624
      %v1737 = vpack.c.bf16 %v1633, %v1629
      %v1738 = vpack.c.bf16 %v1634, %v1630
      %v1739 = vpack.c.bf16 %v1635, %v1631
      %v1740 = vpack.c.bf16 %v1636, %v1632
      %v1741 = vpack.c.bf16 %v1641, %v1637
      %v1742 = vpack.c.bf16 %v1642, %v1638
      %v1743 = vpack.c.bf16 %v1643, %v1639
      %v1744 = vpack.c.bf16 %v1644, %v1640
      %v1745 = vpack.c.bf16 %v1649, %v1645
      %v1746 = vpack.c.bf16 %v1650, %v1646
      %v1747 = vpack.c.bf16 %v1651, %v1647
      %v1748 = vpack.c.bf16 %v1652, %v1648
      %v1749 = vpack.c.bf16 %v1657, %v1653
      %v1750 = vpack.c.bf16 %v1658, %v1654
      %v1751 = vpack.c.bf16 %v1659, %v1655
      %v1752 = vpack.c.bf16 %v1660, %v1656
      %v1753 = vpack.c.bf16 %v1665, %v1661
      %v1754 = vpack.c.bf16 %v1666, %v1662
      %v1755 = vpack.c.bf16 %v1667, %v1663
      %v1756 = vpack.c.bf16 %v1668, %v1664
      %v1757 = vpack.c.bf16 %v1673, %v1669
      %v1758 = vpack.c.bf16 %v1674, %v1670
      %v1759 = vpack.c.bf16 %v1675, %v1671
      %v1760 = vpack.c.bf16 %v1676, %v1672
      %v1761 = vpack.c.bf16 %v1681, %v1677
      %v1762 = vpack.c.bf16 %v1682, %v1678
      %v1763 = vpack.c.bf16 %v1683, %v1679
      %v1764 = vpack.c.bf16 %v1684, %v1680
      %v1765 = vpack.c.bf16 %v1689, %v1685
      %v1766 = vpack.c.bf16 %v1690, %v1686
      %v1767 = vpack.c.bf16 %v1691, %v1687
      %v1768 = vpack.c.bf16 %v1692, %v1688
      %v1769 = vpack.c.bf16 %v1697, %v1693
      %v1770 = vpack.c.bf16 %v1698, %v1694
      %v1771 = vpack.c.bf16 %v1699, %v1695
      %v1772 = vpack.c.bf16 %v1700, %v1696
      %v1773 = vpack.c.bf16 %v1705, %v1701
      %v1774 = vpack.c.bf16 %v1706, %v1702
      %v1775 = vpack.c.bf16 %v1707, %v1703
      %v1776 = vpack.c.bf16 %v1708, %v1704
      %v1777 = vpack.c.bf16 %v1713, %v1709
      %v1778 = vpack.c.bf16 %v1714, %v1710
      %v1779 = vpack.c.bf16 %v1715, %v1711
      %v1780 = vpack.c.bf16 %v1716, %v1712
      %v1845 = vunpack.c.l.b16 %v1717
      %v1846 = vunpack.c.l.b16 %v1718
      %v1847 = vunpack.c.l.b16 %v1719
      %v1848 = vunpack.c.l.b16 %v1720
      %v1849 = vunpack.c.h.b16 %v1717
      %v1850 = vunpack.c.h.b16 %v1718
      %v1851 = vunpack.c.h.b16 %v1719
      %v1852 = vunpack.c.h.b16 %v1720
      %v1853 = vunpack.c.l.b16 %v1721
      %v1854 = vunpack.c.l.b16 %v1722
      %v1855 = vunpack.c.l.b16 %v1723
      %v1856 = vunpack.c.l.b16 %v1724
      %v1857 = vunpack.c.h.b16 %v1721
      %v1858 = vunpack.c.h.b16 %v1722
      %v1859 = vunpack.c.h.b16 %v1723
      %v1860 = vunpack.c.h.b16 %v1724
      %v1861 = vunpack.c.l.b16 %v1725
      %v1862 = vunpack.c.l.b16 %v1726
      %v1863 = vunpack.c.l.b16 %v1727
      %v1864 = vunpack.c.l.b16 %v1728
      %v1865 = vunpack.c.h.b16 %v1725
      %v1866 = vunpack.c.h.b16 %v1726
      %v1867 = vunpack.c.h.b16 %v1727
      %v1868 = vunpack.c.h.b16 %v1728
      %v1869 = vunpack.c.l.b16 %v1729
      %v1870 = vunpack.c.l.b16 %v1730
      %v1871 = vunpack.c.l.b16 %v1731
      %v1872 = vunpack.c.l.b16 %v1732
      %v1873 = vunpack.c.h.b16 %v1729
      %v1874 = vunpack.c.h.b16 %v1730
      %v1875 = vunpack.c.h.b16 %v1731
      %v1876 = vunpack.c.h.b16 %v1732
      %v1877 = vunpack.c.l.b16 %v1733
      %v1878 = vunpack.c.l.b16 %v1734
      %v1879 = vunpack.c.l.b16 %v1735
      %v1880 = vunpack.c.l.b16 %v1736
      %v1881 = vunpack.c.h.b16 %v1733
      %v1882 = vunpack.c.h.b16 %v1734
      %v1883 = vunpack.c.h.b16 %v1735
      %v1884 = vunpack.c.h.b16 %v1736
      %v1885 = vunpack.c.l.b16 %v1737
      %v1886 = vunpack.c.l.b16 %v1738
      %v1887 = vunpack.c.l.b16 %v1739
      %v1888 = vunpack.c.l.b16 %v1740
      %v1889 = vunpack.c.h.b16 %v1737
      %v1890 = vunpack.c.h.b16 %v1738
      %v1891 = vunpack.c.h.b16 %v1739
      %v1892 = vunpack.c.h.b16 %v1740
      %v1893 = vunpack.c.l.b16 %v1741
      %v1894 = vunpack.c.l.b16 %v1742
      %v1895 = vunpack.c.l.b16 %v1743
      %v1896 = vunpack.c.l.b16 %v1744
      %v1897 = vunpack.c.h.b16 %v1741
      %v1898 = vunpack.c.h.b16 %v1742
      %v1899 = vunpack.c.h.b16 %v1743
      %v1900 = vunpack.c.h.b16 %v1744
      %v1901 = vunpack.c.l.b16 %v1745
      %v1902 = vunpack.c.l.b16 %v1746
      %v1903 = vunpack.c.l.b16 %v1747
      %v1904 = vunpack.c.l.b16 %v1748
      %v1905 = vunpack.c.h.b16 %v1745
      %v1906 = vunpack.c.h.b16 %v1746
      %v1907 = vunpack.c.h.b16 %v1747
      %v1908 = vunpack.c.h.b16 %v1748
      %v1909 = vunpack.c.l.b16 %v1749
      %v1910 = vunpack.c.l.b16 %v1750
      %v1911 = vunpack.c.l.b16 %v1751
      %v1912 = vunpack.c.l.b16 %v1752
      %v1913 = vunpack.c.h.b16 %v1749
      %v1914 = vunpack.c.h.b16 %v1750
      %v1915 = vunpack.c.h.b16 %v1751
      %v1916 = vunpack.c.h.b16 %v1752
      %v1917 = vunpack.c.l.b16 %v1753
      %v1918 = vunpack.c.l.b16 %v1754
      %v1919 = vunpack.c.l.b16 %v1755
      %v1920 = vunpack.c.l.b16 %v1756
      %v1921 = vunpack.c.h.b16 %v1753
      %v1922 = vunpack.c.h.b16 %v1754
      %v1923 = vunpack.c.h.b16 %v1755
      %v1924 = vunpack.c.h.b16 %v1756
      %v1925 = vunpack.c.l.b16 %v1757
      %v1926 = vunpack.c.l.b16 %v1758
      %v1927 = vunpack.c.l.b16 %v1759
      %v1928 = vunpack.c.l.b16 %v1760
      %v1929 = vunpack.c.h.b16 %v1757
      %v1930 = vunpack.c.h.b16 %v1758
      %v1931 = vunpack.c.h.b16 %v1759
      %v1932 = vunpack.c.h.b16 %v1760
      %v1933 = vunpack.c.l.b16 %v1761
      %v1934 = vunpack.c.l.b16 %v1762
      %v1935 = vunpack.c.l.b16 %v1763
      %v1936 = vunpack.c.l.b16 %v1764
      %v1937 = vunpack.c.h.b16 %v1761
      %v1938 = vunpack.c.h.b16 %v1762
      %v1939 = vunpack.c.h.b16 %v1763
      %v1940 = vunpack.c.h.b16 %v1764
      %v1941 = vunpack.c.l.b16 %v1765
      %v1942 = vunpack.c.l.b16 %v1766
      %v1943 = vunpack.c.l.b16 %v1767
      %v1944 = vunpack.c.l.b16 %v1768
      %v1945 = vunpack.c.h.b16 %v1765
      %v1946 = vunpack.c.h.b16 %v1766
      %v1947 = vunpack.c.h.b16 %v1767
      %v1948 = vunpack.c.h.b16 %v1768
      %v1949 = vunpack.c.l.b16 %v1769
      %v1950 = vunpack.c.l.b16 %v1770
      %v1951 = vunpack.c.l.b16 %v1771
      %v1952 = vunpack.c.l.b16 %v1772
      %v1953 = vunpack.c.h.b16 %v1769
      %v1954 = vunpack.c.h.b16 %v1770
      %v1955 = vunpack.c.h.b16 %v1771
      %v1956 = vunpack.c.h.b16 %v1772
      %v1957 = vunpack.c.l.b16 %v1773
      %v1958 = vunpack.c.l.b16 %v1774
      %v1959 = vunpack.c.l.b16 %v1775
      %v1960 = vunpack.c.l.b16 %v1776
      %v1961 = vunpack.c.h.b16 %v1773
      %v1962 = vunpack.c.h.b16 %v1774
      %v1963 = vunpack.c.h.b16 %v1775
      %v1964 = vunpack.c.h.b16 %v1776
      %v1965 = vunpack.c.l.b16 %v1777
      %v1966 = vunpack.c.l.b16 %v1778
      %v1967 = vunpack.c.l.b16 %v1779
      %v1968 = vunpack.c.l.b16 %v1780
      %v1969 = vunpack.c.h.b16 %v1777
      %v1970 = vunpack.c.h.b16 %v1778
      %v1971 = vunpack.c.h.b16 %v1779
      %v1972 = vunpack.c.h.b16 %v1780
      %v1973 = vpack.c.b16 %v1846, %v1845
      %v1974 = vpack.c.b16 %v1848, %v1847
      %v1975 = vpack.c.b16 %v1850, %v1849
      %v1976 = vpack.c.b16 %v1852, %v1851
      %v1977 = vpack.c.b16 %v1854, %v1853
      %v1978 = vpack.c.b16 %v1856, %v1855
      %v1979 = vpack.c.b16 %v1858, %v1857
      %v1980 = vpack.c.b16 %v1860, %v1859
      %v1981 = vpack.c.b16 %v1862, %v1861
      %v1982 = vpack.c.b16 %v1864, %v1863
      %v1983 = vpack.c.b16 %v1866, %v1865
      %v1984 = vpack.c.b16 %v1868, %v1867
      %v1985 = vpack.c.b16 %v1870, %v1869
      %v1986 = vpack.c.b16 %v1872, %v1871
      %v1987 = vpack.c.b16 %v1874, %v1873
      %v1988 = vpack.c.b16 %v1876, %v1875
      %v1989 = vpack.c.b16 %v1878, %v1877
      %v1990 = vpack.c.b16 %v1880, %v1879
      %v1991 = vpack.c.b16 %v1882, %v1881
      %v1992 = vpack.c.b16 %v1884, %v1883
      %v1993 = vpack.c.b16 %v1886, %v1885
      %v1994 = vpack.c.b16 %v1888, %v1887
      %v1995 = vpack.c.b16 %v1890, %v1889
      %v1996 = vpack.c.b16 %v1892, %v1891
      %v1997 = vpack.c.b16 %v1894, %v1893
      %v1998 = vpack.c.b16 %v1896, %v1895
      %v1999 = vpack.c.b16 %v1898, %v1897
      %v2000 = vpack.c.b16 %v1900, %v1899
      %v2001 = vpack.c.b16 %v1902, %v1901
      %v2002 = vpack.c.b16 %v1904, %v1903
      %v2003 = vpack.c.b16 %v1906, %v1905
      %v2004 = vpack.c.b16 %v1908, %v1907
      %v2005 = vpack.c.b16 %v1910, %v1909
      %v2006 = vpack.c.b16 %v1912, %v1911
      %v2007 = vpack.c.b16 %v1914, %v1913
      %v2008 = vpack.c.b16 %v1916, %v1915
      %v2009 = vpack.c.b16 %v1918, %v1917
      %v2010 = vpack.c.b16 %v1920, %v1919
      %v2011 = vpack.c.b16 %v1922, %v1921
      %v2012 = vpack.c.b16 %v1924, %v1923
      %v2013 = vpack.c.b16 %v1926, %v1925
      %v2014 = vpack.c.b16 %v1928, %v1927
      %v2015 = vpack.c.b16 %v1930, %v1929
      %v2016 = vpack.c.b16 %v1932, %v1931
      %v2017 = vpack.c.b16 %v1934, %v1933
      %v2018 = vpack.c.b16 %v1936, %v1935
      %v2019 = vpack.c.b16 %v1938, %v1937
      %v2020 = vpack.c.b16 %v1940, %v1939
      %v2021 = vpack.c.b16 %v1942, %v1941
      %v2022 = vpack.c.b16 %v1944, %v1943
      %v2023 = vpack.c.b16 %v1946, %v1945
      %v2024 = vpack.c.b16 %v1948, %v1947
      %v2025 = vpack.c.b16 %v1950, %v1949
      %v2026 = vpack.c.b16 %v1952, %v1951
      %v2027 = vpack.c.b16 %v1954, %v1953
      %v2028 = vpack.c.b16 %v1956, %v1955
      %v2029 = vpack.c.b16 %v1958, %v1957
      %v2030 = vpack.c.b16 %v1960, %v1959
      %v2031 = vpack.c.b16 %v1962, %v1961
      %v2032 = vpack.c.b16 %v1964, %v1963
      %v2033 = vpack.c.b16 %v1966, %v1965
      %v2034 = vpack.c.b16 %v1968, %v1967
      %v2035 = vpack.c.b16 %v1970, %v1969
      %v2036 = vpack.c.b16 %v1972, %v1971
      %2101 = vst [vmem:[#allocation9] sm:$0xff] %v1973
      %2102 = vst [vmem:[#allocation9 + $0x8] sm:$0xff] %v1974
      %2103 = vst [vmem:[#allocation9 + $0x10] sm:$0xff] %v1975
      %2104 = vst [vmem:[#allocation9 + $0x18] sm:$0xff] %v1976
      %2105 = vst [vmem:[#allocation9 + $0x20] sm:$0xff] %v1977
      %2106 = vst [vmem:[#allocation9 + $0x28] sm:$0xff] %v1978
      %2107 = vst [vmem:[#allocation9 + $0x30] sm:$0xff] %v1979
      %2108 = vst [vmem:[#allocation9 + $0x38] sm:$0xff] %v1980
      %2109 = vst [vmem:[#allocation9 + $0x40] sm:$0xff] %v1981
      %2110 = vst [vmem:[#allocation9 + $0x48] sm:$0xff] %v1982
      %2111 = vst [vmem:[#allocation9 + $0x50] sm:$0xff] %v1983
      %2112 = vst [vmem:[#allocation9 + $0x58] sm:$0xff] %v1984
      %2113 = vst [vmem:[#allocation9 + $0x60] sm:$0xff] %v1985
      %2114 = vst [vmem:[#allocation9 + $0x68] sm:$0xff] %v1986
      %2115 = vst [vmem:[#allocation9 + $0x70] sm:$0xff] %v1987
      %2116 = vst [vmem:[#allocation9 + $0x78] sm:$0xff] %v1988
      %2117 = vst [vmem:[#allocation9 + $0x80] sm:$0xff] %v1989
      %2118 = vst [vmem:[#allocation9 + $0x88] sm:$0xff] %v1990
      %2119 = vst [vmem:[#allocation9 + $0x90] sm:$0xff] %v1991
      %2120 = vst [vmem:[#allocation9 + $0x98] sm:$0xff] %v1992
      %2121 = vst [vmem:[#allocation9 + $0xa0] sm:$0xff] %v1993
      %2122 = vst [vmem:[#allocation9 + $0xa8] sm:$0xff] %v1994
      %2123 = vst [vmem:[#allocation9 + $0xb0] sm:$0xff] %v1995
      %2124 = vst [vmem:[#allocation9 + $0xb8] sm:$0xff] %v1996
      %2125 = vst [vmem:[#allocation9 + $0xc0] sm:$0xff] %v1997
      %2126 = vst [vmem:[#allocation9 + $0xc8] sm:$0xff] %v1998
      %2127 = vst [vmem:[#allocation9 + $0xd0] sm:$0xff] %v1999
      %2128 = vst [vmem:[#allocation9 + $0xd8] sm:$0xff] %v2000
      %2129 = vst [vmem:[#allocation9 + $0xe0] sm:$0xff] %v2001
      %2130 = vst [vmem:[#allocation9 + $0xe8] sm:$0xff] %v2002
      %2131 = vst [vmem:[#allocation9 + $0xf0] sm:$0xff] %v2003
      %2132 = vst [vmem:[#allocation9 + $0xf8] sm:$0xff] %v2004
      %2133 = vst [vmem:[#allocation9 + $0x100] sm:$0xff] %v2005
      %2134 = vst [vmem:[#allocation9 + $0x108] sm:$0xff] %v2006
      %2135 = vst [vmem:[#allocation9 + $0x110] sm:$0xff] %v2007
      %2136 = vst [vmem:[#allocation9 + $0x118] sm:$0xff] %v2008
      %2137 = vst [vmem:[#allocation9 + $0x120] sm:$0xff] %v2009
      %2138 = vst [vmem:[#allocation9 + $0x128] sm:$0xff] %v2010
      %2139 = vst [vmem:[#allocation9 + $0x130] sm:$0xff] %v2011
      %2140 = vst [vmem:[#allocation9 + $0x138] sm:$0xff] %v2012
      %2141 = vst [vmem:[#allocation9 + $0x140] sm:$0xff] %v2013
      %2142 = vst [vmem:[#allocation9 + $0x148] sm:$0xff] %v2014
      %2143 = vst [vmem:[#allocation9 + $0x150] sm:$0xff] %v2015
      %2144 = vst [vmem:[#allocation9 + $0x158] sm:$0xff] %v2016
      %2145 = vst [vmem:[#allocation9 + $0x160] sm:$0xff] %v2017
      %2146 = vst [vmem:[#allocation9 + $0x168] sm:$0xff] %v2018
      %2147 = vst [vmem:[#allocation9 + $0x170] sm:$0xff] %v2019
      %2148 = vst [vmem:[#allocation9 + $0x178] sm:$0xff] %v2020
      %2149 = vst [vmem:[#allocation9 + $0x180] sm:$0xff] %v2021
      %2150 = vst [vmem:[#allocation9 + $0x188] sm:$0xff] %v2022
      %2151 = vst [vmem:[#allocation9 + $0x190] sm:$0xff] %v2023
      %2152 = vst [vmem:[#allocation9 + $0x198] sm:$0xff] %v2024
      %2153 = vst [vmem:[#allocation9 + $0x1a0] sm:$0xff] %v2025
      %2154 = vst [vmem:[#allocation9 + $0x1a8] sm:$0xff] %v2026
      %2155 = vst [vmem:[#allocation9 + $0x1b0] sm:$0xff] %v2027
      %2156 = vst [vmem:[#allocation9 + $0x1b8] sm:$0xff] %v2028
      %2157 = vst [vmem:[#allocation9 + $0x1c0] sm:$0xff] %v2029
      %2158 = vst [vmem:[#allocation9 + $0x1c8] sm:$0xff] %v2030
      %2159 = vst [vmem:[#allocation9 + $0x1d0] sm:$0xff] %v2031
      %2160 = vst [vmem:[#allocation9 + $0x1d8] sm:$0xff] %v2032
      %2161 = vst [vmem:[#allocation9 + $0x1e0] sm:$0xff] %v2033
      %2162 = vst [vmem:[#allocation9 + $0x1e8] sm:$0xff] %v2034
      %2163 = vst [vmem:[#allocation9 + $0x1f0] sm:$0xff] %v2035
      %2164 = vst [vmem:[#allocation9 + $0x1f8] sm:$0xff] %v2036
    $region33: #{tpu_custom_call.1} parent=1 // pred_fallthru
      _
    // Predicated region
    $region34: #{tpu_custom_call.1} parent=1 // pred_check
      _
    $region35: #{tpu_custom_call.1} parent=1 // pred_check_branch
      %2166 = sbr.rel (0) target = $region37
    $region36: #{tpu_custom_call.1} parent=1 // pred_region
      %s2168 = ssub.s32 8192, 8192
      %2169 = vsyncadd [#allocation5], %s2168
      %s2170 = sshll.u32 [#allocation9], 4
      %s2171 = int_to_ptr.vmem [resolvable:$true] %s2170
      %2176 = dma.vmem_to_hbm [thread:$0]  %s2171, 8192, %s3, [#allocation5], 256, 256, 16
    $region37: #{tpu_custom_call.1} parent=1 // pred_fallthru
      _
    // Predicated region
    $region38: #{tpu_custom_call.1} parent=1 // pred_check
      _
    $region39: #{tpu_custom_call.1} parent=1 // pred_check_branch
      %2178 = sbr.rel (0) target = $region41
    $region40: #{tpu_custom_call.1} parent=1 // pred_region
      %2179 = dma.done [#allocation5], 8192
    $region41: #{tpu_custom_call.1} parent=1 // pred_fallthru
      _
    %2180 = vsyncpa [#allocation4], 1
    %2181 = vsyncpa [#allocation7], 1
    %2182 = vsyncpa [#allocation5], 1

</llo_original>
